<compile_context>
chip_gen: v7x
topology: tpu7x:2x2x1
jax: 0.10.0
libtpu: 0.0.40
codegen_flags: <defaults>
</compile_context>

<pallas_src>
import functools

import numpy as np
import jax
import jax.numpy as jnp
from jax import lax
from jax.experimental import pallas as pl
from jax.experimental.pallas import tpu as pltpu

BN_EPS = 1e-5
LANE = 128
SUBLANE = 8
TILE_M_MAX = 256                      # sized so 2x (double buffer) fits v7x scoped VMEM
VMEM_LIMIT = 32 * 1024 * 1024         # safe on v5e/v6e/v7x
MATMUL_DTYPE = jnp.float32            # set jnp.bfloat16 on v6e/v7x for ~2x MXU throughput


def _round_up(x, m):
    return ((x + m - 1) // m) * m


# ----------------------------- Pallas kernels ------------------------------

def _conv_stats_kernel(p_ref, w_ref, b_ref, g_ref, beta_ref, ss_ref,
                       sum_sc, sq_sc, *, tile_m, m_valid):
    """Pass 1: accumulate per-channel batch statistics, emit [scale; shift]."""
    m = pl.program_id(0)

    @pl.when(m == 0)
    def _():
        sum_sc[...] = jnp.zeros_like(sum_sc)
        sq_sc[...] = jnp.zeros_like(sq_sc)

    y = jnp.dot(p_ref[...], w_ref[...], preferred_element_type=jnp.float32)
    y = y + b_ref[...]
    if m_valid % tile_m != 0:
        # Mask zero-padded rows out of the statistics.
        row = m * tile_m + lax.broadcasted_iota(jnp.int32, (tile_m, 1), 0)
        y = jnp.where(row < m_valid, y, 0.0)
    sum_sc[...] += jnp.sum(y, axis=0, keepdims=True)
    sq_sc[...] += jnp.sum(y * y, axis=0, keepdims=True)

    @pl.when(m == pl.num_programs(0) - 1)
    def _():
        inv_n = 1.0 / m_valid
        mean = sum_sc[...] * inv_n
        var = jnp.maximum(sq_sc[...] * inv_n - mean * mean, 0.0)
        scale = g_ref[...] * lax.rsqrt(var + BN_EPS)
        shift = beta_ref[...] + (b_ref[...] - mean) * scale   # bias folded in
        ss_ref[0:1, :] = scale
        ss_ref[1:2, :] = shift


def _conv_norm_kernel(p_ref, w_ref, ss_ref, o_ref):
    """Pass 2: relu((patches @ W) * scale + shift) — single FMA + max."""
    z = jnp.dot(p_ref[...], w_ref[...], preferred_element_type=jnp.float32)
    o_ref[...] = jnp.maximum(z * ss_ref[0:1, :] + ss_ref[1:2, :], 0.0)


def _linear_kernel(x_ref, w_ref, b_ref, o_ref):
    o_ref[...] = jnp.dot(x_ref[...], w_ref[...],
                         preferred_element_type=jnp.float32) + b_ref[...]


def _fused_head_kernel(x_ref, w1_ref, b1_ref, w2_ref, b2_ref, o_ref):
    h = jnp.dot(x_ref[...], w1_ref[...],
                preferred_element_type=jnp.float32) + b1_ref[...]
    o_ref[...] = jnp.dot(h.astype(w2_ref.dtype), w2_ref[...],
                         preferred_element_type=jnp.float32) + b2_ref[...]


# ----------------------------- kernel wrappers ------------------------------

def conv_bn_relu(patches, w_flat, b, gamma, beta):
    """patches (M, K) -> relu(batchnorm(patches @ w_flat + b)), shape (M, Cout)."""
    M, K = patches.shape
    Cout = w_flat.shape[1]
    K_pad = _round_up(K, LANE)
    C_pad = _round_up(Cout, LANE)
    tile_m = min(TILE_M_MAX, _round_up(M, SUBLANE))
    M_pad = _round_up(M, tile_m)
    n_m = M_pad // tile_m

    p = jnp.pad(patches, ((0, M_pad - M), (0, K_pad - K))).astype(MATMUL_DTYPE)
    w = jnp.pad(w_flat, ((0, K_pad - K), (0, C_pad - Cout))).astype(MATMUL_DTYPE)
    b_r = jnp.pad(b, (0, C_pad - Cout)).reshape(1, C_pad)
    g_r = jnp.pad(gamma, (0, C_pad - Cout)).reshape(1, C_pad)
    beta_r = jnp.pad(beta, (0, C_pad - Cout)).reshape(1, C_pad)

    p_spec = pl.BlockSpec((tile_m, K_pad), lambda m: (m, 0))
    w_spec = pl.BlockSpec((K_pad, C_pad), lambda m: (0, 0))
    vec_spec = pl.BlockSpec((1, C_pad), lambda m: (0, 0))
    ss_spec = pl.BlockSpec((2, C_pad), lambda m: (0, 0))

    flops = 2 * M_pad * K_pad * C_pad
    bytes_in = (M_pad * K_pad + K_pad * C_pad) * p.dtype.itemsize

    # Pass 1: global per-channel stats -> folded (scale, shift).
    ss = pl.pallas_call(
        functools.partial(_conv_stats_kernel, tile_m=tile_m, m_valid=M),
        out_shape=jax.ShapeDtypeStruct((2, C_pad), jnp.float32),
        grid_spec=pltpu.PrefetchScalarGridSpec(
            num_scalar_prefetch=0,
            grid=(n_m,),
            in_specs=[p_spec, w_spec, vec_spec, vec_spec, vec_spec],
            out_specs=ss_spec,
            scratch_shapes=[pltpu.VMEM((1, C_pad), jnp.float32),
                            pltpu.VMEM((1, C_pad), jnp.float32)]),
        compiler_params=pltpu.CompilerParams(
            dimension_semantics=("arbitrary",),
            vmem_limit_bytes=VMEM_LIMIT),
        cost_estimate=pl.CostEstimate(flops=flops, transcendentals=0,
                                      bytes_accessed=bytes_in + 2 * C_pad * 4),
    )(p, w, b_r, g_r, beta_r)

    # Pass 2: normalize + ReLU, tiled over M (megacore-parallel on v7x).
    out = pl.pallas_call(
        _conv_norm_kernel,
        out_shape=jax.ShapeDtypeStruct((M_pad, C_pad), jnp.float32),
        grid_spec=pltpu.PrefetchScalarGridSpec(
            num_scalar_prefetch=0,
            grid=(n_m,),
            in_specs=[p_spec, w_spec, ss_spec],
            out_specs=pl.BlockSpec((tile_m, C_pad), lambda m: (m, 0))),
        compiler_params=pltpu.CompilerParams(
            dimension_semantics=("parallel",),
            vmem_limit_bytes=VMEM_LIMIT),
        cost_estimate=pl.CostEstimate(flops=flops, transcendentals=0,
                                      bytes_accessed=bytes_in + M_pad * C_pad * 4),
    )(p, w, ss)

    return out[:M, :Cout]


def linear_head(x, w1, b1, w2=None, b2=None):
    """x (B, F) @ padded w1 (+ optional fused second linear). Returns (B, O_pad)."""
    B, F = x.shape
    F_pad = w1.shape[0]
    tile_b = min(128, _round_up(B, SUBLANE))
    B_pad = _round_up(B, tile_b)
    n_b = B_pad // tile_b
    xp = jnp.pad(x, ((0, B_pad - B), (0, F_pad - F))).astype(MATMUL_DTYPE)

    x_spec = pl.BlockSpec((tile_b, F_pad), lambda i: (i, 0))
    cparams = pltpu.CompilerParams(dimension_semantics=("parallel",),
                                   vmem_limit_bytes=VMEM_LIMIT)

    if w2 is None:
        O_pad = w1.shape[1]
        out = pl.pallas_call(
            _linear_kernel,
            out_shape=jax.ShapeDtypeStruct((B_pad, O_pad), jnp.float32),
            grid_spec=pltpu.PrefetchScalarGridSpec(
                num_scalar_prefetch=0, grid=(n_b,),
                in_specs=[x_spec,
                          pl.BlockSpec((F_pad, O_pad), lambda i: (0, 0)),
                          pl.BlockSpec((1, O_pad), lambda i: (0, 0))],
                out_specs=pl.BlockSpec((tile_b, O_pad), lambda i: (i, 0))),
            compiler_params=cparams,
        )(xp, w1, b1)
    else:
        O1_pad = w1.shape[1]
        O_pad = w2.shape[1]
        out = pl.pallas_call(
            _fused_head_kernel,
            out_shape=jax.ShapeDtypeStruct((B_pad, O_pad), jnp.float32),
            grid_spec=pltpu.PrefetchScalarGridSpec(
                num_scalar_prefetch=0, grid=(n_b,),
                in_specs=[x_spec,
                          pl.BlockSpec((F_pad, O1_pad), lambda i: (0, 0)),
                          pl.BlockSpec((1, O1_pad), lambda i: (0, 0)),
                          pl.BlockSpec((O1_pad, O_pad), lambda i: (0, 0)),
                          pl.BlockSpec((1, O_pad), lambda i: (0, 0))],
                out_specs=pl.BlockSpec((tile_b, O_pad), lambda i: (i, 0))),
            compiler_params=cparams,
        )(xp, w1, b1, w2, b2)
    return out[:B]


# ------------------------------- JAX glue -----------------------------------

def im2col_nhwc(x_nhwc, k, s, pad):
    """x_nhwc (B,H,W,C) -> patches (B*Ho*Wo, C*k*k) with column order (C, kh, kw)."""
    B, H, W, C = x_nhwc.shape
    xp = jnp.pad(x_nhwc, ((0, 0), (pad, pad), (pad, pad), (0, 0)))
    Ho = (H + 2 * pad - k) // s + 1
    Wo = (W + 2 * pad - k) // s + 1
    slices = []
    for i in range(k):
        for j in range(k):
            slices.append(xp[:, i:i + s * Ho:s, j:j + s * Wo:s, :])  # (B,Ho,Wo,C)
    p = jnp.stack(slices, axis=0).reshape(k, k, B, Ho, Wo, C)
    p = p.transpose(2, 3, 4, 5, 0, 1)                # (B, Ho, Wo, C, kh, kw)
    return p.reshape(B * Ho * Wo, C * k * k), Ho, Wo


def init_params(key, img_size, in_channels, out_channels, k, out_features,
                num_classes, n_layers):
    """Deterministic parameter init matching the PyTorch module's shapes."""
    params = {"conv": []}
    c_in, c_out = in_channels, out_channels
    for _ in range(n_layers):
        key, kw_, kb_ = jax.random.split(key, 3)
        fan_in = c_in * k * k
        bound = 1.0 / np.sqrt(fan_in)
        w = jax.random.uniform(kw_, (c_out, c_in, k, k), jnp.float32, -bound, bound)
        b = jax.random.uniform(kb_, (c_out,), jnp.float32, -bound, bound)
        gamma = jnp.ones((c_out,), jnp.float32)
        beta = jnp.zeros((c_out,), jnp.float32)
        params["conv"].append((w, b, gamma, beta))
        c_in, c_out = c_out, c_out * 2
    feature_size = img_size // (2 ** n_layers)
    mlp_in = feature_size ** 2 * c_in
    key, kw_, kb_ = jax.random.split(key, 3)
    bound = 1.0 / np.sqrt(mlp_in)
    params["mlp_w"] = jax.random.uniform(kw_, (out_features, mlp_in), jnp.float32, -bound, bound)
    params["mlp_b"] = jax.random.uniform(kb_, (out_features,), jnp.float32, -bound, bound)
    key, kw_, kb_ = jax.random.split(key, 3)
    bound = 1.0 / np.sqrt(out_features)
    params["fc_w"] = jax.random.uniform(kw_, (num_classes, out_features), jnp.float32, -bound, bound)
    params["fc_b"] = jax.random.uniform(kb_, (num_classes,), jnp.float32, -bound, bound)
    return params


def prepare_params(params, img_size, n_layers):
    """One-time kernel-friendly re-layout of the PyTorch-shaped parameters."""
    prep = {"conv": []}
    for (w, b, gamma, beta) in params["conv"]:
        c_out = w.shape[0]
        # OIHW -> (Cin*k*k, Cout), matching the (C, kh, kw) patch column order.
        w_flat = w.reshape(c_out, -1).T
        prep["conv"].append((w_flat, b, gamma, beta))

    c_last = params["conv"][-1][0].shape[0]
    fs = img_size // (2 ** n_layers)
    O1, F = params["mlp_w"].shape
    # Permute mlp_w columns from NCHW-flatten to NHWC-flatten order so the conv
    # output feeds the Linear directly (no activation transpose at runtime).
    w1 = params["mlp_w"].reshape(O1, c_last, fs, fs).transpose(0, 2, 3, 1)
    w1 = w1.reshape(O1, F).T                                  # (F, O1)
    F_pad, O1_pad = _round_up(F, LANE), _round_up(O1, LANE)
    prep["mlp_w"] = jnp.pad(w1, ((0, F_pad - F), (0, O1_pad - O1))).astype(MATMUL_DTYPE)
    prep["mlp_b"] = jnp.pad(params["mlp_b"], (0, O1_pad - O1)).reshape(1, O1_pad)

    O2 = params["fc_w"].shape[0]
    O2_pad = _round_up(O2, LANE)
    w2 = params["fc_w"].T                                     # (O1, O2)
    prep["fc_w"] = jnp.pad(w2, ((0, O1_pad - O1), (0, O2_pad - O2))).astype(MATMUL_DTYPE)
    prep["fc_b"] = jnp.pad(params["fc_b"], (0, O2_pad - O2)).reshape(1, O2_pad)
    return prep


@functools.partial(jax.jit, static_argnames=("k", "s", "pad", "out_features",
                                              "num_classes", "predict_class"))
def convnet_forward(x_nchw, prep, *, k, s, pad, out_features, num_classes,
                    predict_class=False):
    B = x_nchw.shape[0]
    y = jnp.transpose(x_nchw, (0, 2, 3, 1))                   # NCHW -> NHWC (once)
    for (w_flat, b, gamma, beta) in prep["conv"]:
        c_out = w_flat.shape[1]
        patches, Ho, Wo = im2col_nhwc(y, k, s, pad)
        out = conv_bn_relu(patches, w_flat, b, gamma, beta)   # (B*Ho*Wo, Cout)
        y = out.reshape(B, Ho, Wo, c_out)
    flat = y.reshape(B, -1)   # NHWC flatten; mlp_w columns were permuted to match
    if predict_class:
        out = linear_head(flat, prep["mlp_w"], prep["mlp_b"],
                          prep["fc_w"], prep["fc_b"])
        return out[:, :num_classes]
    out = linear_head(flat, prep["mlp_w"], prep["mlp_b"])
    return out[:, :out_features]


# ------------------------------ pure-JAX reference ---------------------------

def ref_forward(x_nchw, params, k=3, s=2, pad=1, predict_class=False):
    y = x_nchw
    for (w, b, gamma, beta) in params["conv"]:
        y = lax.conv_general_dilated(y, w, (s, s), [(pad, pad), (pad, pad)],
                                     dimension_numbers=("NCHW", "OIHW", "NCHW"))
        y = y + b[None, :, None, None]
        m = y.mean(axis=(0, 2, 3), keepdims=True)
        v = ((y - m) ** 2).mean(axis=(0, 2, 3), keepdims=True)
        y = (y - m) / jnp.sqrt(v + BN_EPS) * gamma[None, :, None, None] + beta[None, :, None, None]
        y = jnp.maximum(y, 0.0)
    y = y.reshape(y.shape[0], -1)
    y = y @ params["mlp_w"].T + params["mlp_b"]
    if predict_class:
        y = y @ params["fc_w"].T + params["fc_b"]
    return y


# ----------------------------------- main ------------------------------------

if __name__ == "__main__":
    # Small shapes consistent with the module's constructor.
    B, C_IN, IMG = 2, 4, 16
    OUT_CH, K, S, PAD = 16, 3, 2, 1
    OUT_FEATURES, NUM_CLASSES, N_LAYERS = 32, 10, 2

    key = jax.random.PRNGKey(0)
    key, kx = jax.random.split(key)
    x = jax.random.normal(kx, (B, C_IN, IMG, IMG), jnp.float32)

    params = init_params(key, IMG, C_IN, OUT_CH, K, OUT_FEATURES,
                         NUM_CLASSES, N_LAYERS)
    prep = prepare_params(params, IMG, N_LAYERS)

    out = convnet_forward(x, prep, k=K, s=S, pad=PAD,
                          out_features=OUT_FEATURES, num_classes=NUM_CLASSES,
                          predict_class=False)
    out = jax.block_until_ready(out)

    ref = jax.block_until_ready(ref_forward(x, params, k=K, s=S, pad=PAD,
                                            predict_class=False))
    np.testing.assert_allclose(np.asarray(out), np.asarray(ref),
                               rtol=1e-4, atol=1e-4)

    # Also exercise the predict_class=True path (fused mlp+fc head).
    out_cls = jax.block_until_ready(
        convnet_forward(x, prep, k=K, s=S, pad=PAD,
                        out_features=OUT_FEATURES, num_classes=NUM_CLASSES,
                        predict_class=True))
    ref_cls = ref_forward(x, params, k=K, s=S, pad=PAD, predict_class=True)
    np.testing.assert_allclose(np.asarray(out_cls), np.asarray(ref_cls),
                               rtol=1e-4, atol=1e-4)

    print("KERNEL_OK")
</pallas_src>

<mosaic_0001>
module attributes {stable_mosaic.version = 11 : i64} {
  func.func @_conv_norm_kernel(%arg0: i32, %arg1: memref<128x128xf32, #tpu.memory_space<vmem>>, %arg2: memref<128x128xf32, #tpu.memory_space<vmem>>, %arg3: memref<2x128xf32, #tpu.memory_space<vmem>>, %arg4: memref<128x128xf32, #tpu.memory_space<vmem>>) attributes {dimension_semantics = [#tpu.dimension_semantics<parallel>], iteration_bounds = array<i64: 1>, scalar_prefetch = 0 : i64, scratch_operands = 0 : i64, tpu.core_type = #tpu.core_type<tc>, window_params = [{transform_indices = @transform_0, window_bounds = array<i64: 128, 128>}, {pipeline_mode = #tpu.pipeline_mode<synchronous>, transform_indices = @transform_1, window_bounds = array<i64: 128, 128>}, {pipeline_mode = #tpu.pipeline_mode<synchronous>, transform_indices = @transform_2, window_bounds = array<i64: 2, 128>}, {transform_indices = @transform_3, window_bounds = array<i64: 128, 128>}]} {
    %c0 = arith.constant 0 : index
    %c0_0 = arith.constant 0 : index
    %0 = vector.load %arg1[%c0, %c0_0] : memref<128x128xf32, #tpu.memory_space<vmem>>, vector<128x128xf32>
    %c0_1 = arith.constant 0 : index
    %c0_2 = arith.constant 0 : index
    %1 = vector.load %arg2[%c0_1, %c0_2] : memref<128x128xf32, #tpu.memory_space<vmem>>, vector<128x128xf32>
    %cst = arith.constant dense<0.000000e+00> : vector<128x128xf32>
    %2 = tpu.matmul %0, %1, %cst {dimension_numbers = #tpu.dot_dimension_numbers<[1], [0], [0], [1], [0, 0, 1, 1], [], []>} : vector<128x128xf32>, vector<128x128xf32>, vector<128x128xf32> -> vector<128x128xf32>
    %c0_3 = arith.constant 0 : index
    %c0_4 = arith.constant 0 : index
    %3 = vector.load %arg3[%c0_3, %c0_4] : memref<2x128xf32, #tpu.memory_space<vmem>>, vector<1x128xf32>
    %4 = vector.broadcast %3 : vector<1x128xf32> to vector<128x128xf32>
    %5 = arith.mulf %2, %4 : vector<128x128xf32>
    %c1 = arith.constant 1 : index
    %c0_5 = arith.constant 0 : index
    %6 = vector.load %arg3[%c1, %c0_5] : memref<2x128xf32, #tpu.memory_space<vmem>>, vector<1x128xf32>
    %7 = vector.broadcast %6 : vector<1x128xf32> to vector<128x128xf32>
    %8 = arith.addf %5, %7 : vector<128x128xf32>
    %cst_6 = arith.constant 0.000000e+00 : f32
    %9 = vector.broadcast %cst_6 : f32 to vector<128x128xf32>
    %10 = arith.maximumf %8, %9 : vector<128x128xf32>
    %c0_7 = arith.constant 0 : index
    %c0_8 = arith.constant 0 : index
    %11 = vector.load %arg4[%c0_7, %c0_8] : memref<128x128xf32, #tpu.memory_space<vmem>>, vector<128x128xf32>
    tpu.vector_store %arg4[%c0_7, %c0_8], %10 {strides = array<i32>} : memref<128x128xf32, #tpu.memory_space<vmem>>, vector<128x128xf32>,
    return
  }
  func.func @transform_0(%arg0: i32) -> (i32, i32) {
    %c0_i32 = arith.constant 0 : i32
    %c0_i32_0 = arith.constant 0 : i32
    return %arg0, %c0_i32 : i32, i32
  }
  func.func @transform_1(%arg0: i32) -> (i32, i32) {
    %c0_i32 = arith.constant 0 : i32
    %c0_i32_0 = arith.constant 0 : i32
    %c0_i32_1 = arith.constant 0 : i32
    return %c0_i32, %c0_i32_0 : i32, i32
  }
  func.func @transform_2(%arg0: i32) -> (i32, i32) {
    %c0_i32 = arith.constant 0 : i32
    %c0_i32_0 = arith.constant 0 : i32
    %c0_i32_1 = arith.constant 0 : i32
    return %c0_i32, %c0_i32_0 : i32, i32
  }
  func.func @transform_3(%arg0: i32) -> (i32, i32) {
    %c0_i32 = arith.constant 0 : i32
    %c0_i32_0 = arith.constant 0 : i32
    return %arg0, %c0_i32 : i32, i32
  }
}

module attributes {stable_mosaic.version = 11 : i64} {
  func.func @_conv_stats_kernel(%arg0: i32, %arg1: memref<128x128xf32, #tpu.memory_space<vmem>>, %arg2: memref<128x128xf32, #tpu.memory_space<vmem>>, %arg3: memref<1x128xf32, #tpu.memory_space<vmem>>, %arg4: memref<1x128xf32, #tpu.memory_space<vmem>>, %arg5: memref<1x128xf32, #tpu.memory_space<vmem>>, %arg6: memref<2x128xf32, #tpu.memory_space<vmem>>, %arg7: memref<1x128xf32, #tpu.memory_space<vmem>>, %arg8: memref<1x128xf32, #tpu.memory_space<vmem>>) attributes {dimension_semantics = [#tpu.dimension_semantics<arbitrary>], iteration_bounds = array<i64: 1>, scalar_prefetch = 0 : i64, scratch_operands = 2 : i64, tpu.core_type = #tpu.core_type<tc>, window_params = [{transform_indices = @transform_0, window_bounds = array<i64: 128, 128>}, {pipeline_mode = #tpu.pipeline_mode<synchronous>, transform_indices = @transform_1, window_bounds = array<i64: 128, 128>}, {pipeline_mode = #tpu.pipeline_mode<synchronous>, transform_indices = @transform_2, window_bounds = array<i64: 1, 128>}, {pipeline_mode = #tpu.pipeline_mode<synchronous>, transform_indices = @transform_3, window_bounds = array<i64: 1, 128>}, {pipeline_mode = #tpu.pipeline_mode<synchronous>, transform_indices = @transform_4, window_bounds = array<i64: 1, 128>}, {pipeline_mode = #tpu.pipeline_mode<synchronous>, transform_indices = @transform_5, window_bounds = array<i64: 2, 128>}]} {
    %c0_i32 = arith.constant 0 : i32
    %0 = arith.cmpi eq, %arg0, %c0_i32 : i32
    %1 = arith.extui %0 : i1 to i32
    %c0_i32_0 = arith.constant 0 : i32
    %2 = arith.cmpi ne, %1, %c0_i32_0 : i32
    scf.if %2 {
      %cst_18 = arith.constant 0.000000e+00 : f32
      %23 = vector.broadcast %cst_18 : f32 to vector<1x128xf32>
      %c0_19 = arith.constant 0 : index
      %c0_20 = arith.constant 0 : index
      %24 = vector.load %arg7[%c0_19, %c0_20] : memref<1x128xf32, #tpu.memory_space<vmem>>, vector<1x128xf32>
      tpu.vector_store %arg7[%c0_19, %c0_20], %23 {strides = array<i32>} : memref<1x128xf32, #tpu.memory_space<vmem>>, vector<1x128xf32>,
      %cst_21 = arith.constant 0.000000e+00 : f32
      %25 = vector.broadcast %cst_21 : f32 to vector<1x128xf32>
      %c0_22 = arith.constant 0 : index
      %c0_23 = arith.constant 0 : index
      %26 = vector.load %arg8[%c0_22, %c0_23] : memref<1x128xf32, #tpu.memory_space<vmem>>, vector<1x128xf32>
      tpu.vector_store %arg8[%c0_22, %c0_23], %25 {strides = array<i32>} : memref<1x128xf32, #tpu.memory_space<vmem>>, vector<1x128xf32>,
    } else {
    }
    %c0 = arith.constant 0 : index
    %c0_1 = arith.constant 0 : index
    %3 = vector.load %arg1[%c0, %c0_1] : memref<128x128xf32, #tpu.memory_space<vmem>>, vector<128x128xf32>
    %c0_2 = arith.constant 0 : index
    %c0_3 = arith.constant 0 : index
    %4 = vector.load %arg2[%c0_2, %c0_3] : memref<128x128xf32, #tpu.memory_space<vmem>>, vector<128x128xf32>
    %cst = arith.constant dense<0.000000e+00> : vector<128x128xf32>
    %5 = tpu.matmul %3, %4, %cst {dimension_numbers = #tpu.dot_dimension_numbers<[1], [0], [0], [1], [0, 0, 1, 1], [], []>} : vector<128x128xf32>, vector<128x128xf32>, vector<128x128xf32> -> vector<128x128xf32>
    %c0_4 = arith.constant 0 : index
    %c0_5 = arith.constant 0 : index
    %6 = vector.load %arg3[%c0_4, %c0_5] : memref<1x128xf32, #tpu.memory_space<vmem>>, vector<1x128xf32>
    %7 = vector.broadcast %6 : vector<1x128xf32> to vector<128x128xf32>
    %8 = arith.addf %5, %7 : vector<128x128xf32>
    %c0_6 = arith.constant 0 : index
    %c0_7 = arith.constant 0 : index
    %9 = vector.load %arg7[%c0_6, %c0_7] : memref<1x128xf32, #tpu.memory_space<vmem>>, vector<1x128xf32>
    %cst_8 = arith.constant dense<0.000000e+00> : vector<128xf32>
    %10 = vector.multi_reduction <add>, %8, %cst_8 [0] : vector<128x128xf32> to vector<128xf32>
    %11 = vector.shape_cast %10 : vector<128xf32> to vector<1x128xf32>
    %12 = arith.addf %9, %11 : vector<1x128xf32>
    %c0_9 = arith.constant 0 : index
    %c0_10 = arith.constant 0 : index
    %13 = vector.load %arg7[%c0_9, %c0_10] : memref<1x128xf32, #tpu.memory_space<vmem>>, vector<1x128xf32>
    tpu.vector_store %arg7[%c0_9, %c0_10], %12 {strides = array<i32>} : memref<1x128xf32, #tpu.memory_space<vmem>>, vector<1x128xf32>,
    %c0_11 = arith.constant 0 : index
    %c0_12 = arith.constant 0 : index
    %14 = vector.load %arg8[%c0_11, %c0_12] : memref<1x128xf32, #tpu.memory_space<vmem>>, vector<1x128xf32>
    %15 = arith.mulf %8, %8 : vector<128x128xf32>
    %cst_13 = arith.constant dense<0.000000e+00> : vector<128xf32>
    %16 = vector.multi_reduction <add>, %15, %cst_13 [0] : vector<128x128xf32> to vector<128xf32>
    %17 = vector.shape_cast %16 : vector<128xf32> to vector<1x128xf32>
    %18 = arith.addf %14, %17 : vector<1x128xf32>
    %c0_14 = arith.constant 0 : index
    %c0_15 = arith.constant 0 : index
    %19 = vector.load %arg8[%c0_14, %c0_15] : memref<1x128xf32, #tpu.memory_space<vmem>>, vector<1x128xf32>
    tpu.vector_store %arg8[%c0_14, %c0_15], %18 {strides = array<i32>} : memref<1x128xf32, #tpu.memory_space<vmem>>, vector<1x128xf32>,
    %c0_i32_16 = arith.constant 0 : i32
    %20 = arith.cmpi eq, %arg0, %c0_i32_16 : i32
    %21 = arith.extui %20 : i1 to i32
    %c0_i32_17 = arith.constant 0 : i32
    %22 = arith.cmpi ne, %21, %c0_i32_17 : i32
    scf.if %22 {
      %c0_18 = arith.constant 0 : index
      %c0_19 = arith.constant 0 : index
      %23 = vector.load %arg7[%c0_18, %c0_19] : memref<1x128xf32, #tpu.memory_space<vmem>>, vector<1x128xf32>
      %cst_20 = arith.constant 7.812500e-03 : f32
      %24 = vector.broadcast %cst_20 : f32 to vector<1x128xf32>
      %25 = arith.mulf %23, %24 : vector<1x128xf32>
      %c0_21 = arith.constant 0 : index
      %c0_22 = arith.constant 0 : index
      %26 = vector.load %arg8[%c0_21, %c0_22] : memref<1x128xf32, #tpu.memory_space<vmem>>, vector<1x128xf32>
      %cst_23 = arith.constant 7.812500e-03 : f32
      %27 = vector.broadcast %cst_23 : f32 to vector<1x128xf32>
      %28 = arith.mulf %26, %27 : vector<1x128xf32>
      %29 = arith.mulf %25, %25 : vector<1x128xf32>
      %30 = arith.subf %28, %29 : vector<1x128xf32>
      %cst_24 = arith.constant 0.000000e+00 : f32
      %31 = vector.broadcast %cst_24 : f32 to vector<1x128xf32>
      %32 = arith.maximumf %30, %31 : vector<1x128xf32>
      %c0_25 = arith.constant 0 : index
      %c0_26 = arith.constant 0 : index
      %33 = vector.load %arg4[%c0_25, %c0_26] : memref<1x128xf32, #tpu.memory_space<vmem>>, vector<1x128xf32>
      %cst_27 = arith.constant 9.99999974E-6 : f32
      %34 = vector.broadcast %cst_27 : f32 to vector<1x128xf32>
      %35 = arith.addf %32, %34 : vector<1x128xf32>
      %36 = math.rsqrt %35 : vector<1x128xf32>
      %37 = arith.mulf %33, %36 : vector<1x128xf32>
      %c0_28 = arith.constant 0 : index
      %c0_29 = arith.constant 0 : index
      %38 = vector.load %arg5[%c0_28, %c0_29] : memref<1x128xf32, #tpu.memory_space<vmem>>, vector<1x128xf32>
      %c0_30 = arith.constant 0 : index
      %c0_31 = arith.constant 0 : index
      %39 = vector.load %arg3[%c0_30, %c0_31] : memref<1x128xf32, #tpu.memory_space<vmem>>, vector<1x128xf32>
      %40 = arith.subf %39, %25 : vector<1x128xf32>
      %41 = arith.mulf %40, %37 : vector<1x128xf32>
      %42 = arith.addf %38, %41 : vector<1x128xf32>
      %c0_32 = arith.constant 0 : index
      %c0_33 = arith.constant 0 : index
      %43 = vector.load %arg6[%c0_32, %c0_33] : memref<2x128xf32, #tpu.memory_space<vmem>>, vector<1x128xf32>
      tpu.vector_store %arg6[%c0_32, %c0_33], %37 {strides = array<i32>} : memref<2x128xf32, #tpu.memory_space<vmem>>, vector<1x128xf32>,
      %c1 = arith.constant 1 : index
      %c0_34 = arith.constant 0 : index
      %44 = vector.load %arg6[%c1, %c0_34] : memref<2x128xf32, #tpu.memory_space<vmem>>, vector<1x128xf32>
      tpu.vector_store %arg6[%c1, %c0_34], %42 {strides = array<i32>} : memref<2x128xf32, #tpu.memory_space<vmem>>, vector<1x128xf32>,
    } else {
    }
    return
  }
  func.func @transform_0(%arg0: i32) -> (i32, i32) {
    %c0_i32 = arith.constant 0 : i32
    %c0_i32_0 = arith.constant 0 : i32
    return %arg0, %c0_i32 : i32, i32
  }
  func.func @transform_1(%arg0: i32) -> (i32, i32) {
    %c0_i32 = arith.constant 0 : i32
    %c0_i32_0 = arith.constant 0 : i32
    %c0_i32_1 = arith.constant 0 : i32
    return %c0_i32, %c0_i32_0 : i32, i32
  }
  func.func @transform_2(%arg0: i32) -> (i32, i32) {
    %c0_i32 = arith.constant 0 : i32
    %c0_i32_0 = arith.constant 0 : i32
    %c0_i32_1 = arith.constant 0 : i32
    return %c0_i32, %c0_i32_0 : i32, i32
  }
  func.func @transform_3(%arg0: i32) -> (i32, i32) {
    %c0_i32 = arith.constant 0 : i32
    %c0_i32_0 = arith.constant 0 : i32
    %c0_i32_1 = arith.constant 0 : i32
    return %c0_i32, %c0_i32_0 : i32, i32
  }
  func.func @transform_4(%arg0: i32) -> (i32, i32) {
    %c0_i32 = arith.constant 0 : i32
    %c0_i32_0 = arith.constant 0 : i32
    %c0_i32_1 = arith.constant 0 : i32
    return %c0_i32, %c0_i32_0 : i32, i32
  }
  func.func @transform_5(%arg0: i32) -> (i32, i32) {
    %c0_i32 = arith.constant 0 : i32
    %c0_i32_0 = arith.constant 0 : i32
    %c0_i32_1 = arith.constant 0 : i32
    return %c0_i32, %c0_i32_0 : i32, i32
  }
}

module attributes {stable_mosaic.version = 11 : i64} {
  func.func @_conv_norm_kernel(%arg0: i32, %arg1: memref<32x256xf32, #tpu.memory_space<vmem>>, %arg2: memref<256x128xf32, #tpu.memory_space<vmem>>, %arg3: memref<2x128xf32, #tpu.memory_space<vmem>>, %arg4: memref<32x128xf32, #tpu.memory_space<vmem>>) attributes {dimension_semantics = [#tpu.dimension_semantics<parallel>], iteration_bounds = array<i64: 1>, scalar_prefetch = 0 : i64, scratch_operands = 0 : i64, tpu.core_type = #tpu.core_type<tc>, window_params = [{transform_indices = @transform_0, window_bounds = array<i64: 32, 256>}, {pipeline_mode = #tpu.pipeline_mode<synchronous>, transform_indices = @transform_1, window_bounds = array<i64: 256, 128>}, {pipeline_mode = #tpu.pipeline_mode<synchronous>, transform_indices = @transform_2, window_bounds = array<i64: 2, 128>}, {transform_indices = @transform_3, window_bounds = array<i64: 32, 128>}]} {
    %c0 = arith.constant 0 : index
    %c0_0 = arith.constant 0 : index
    %0 = vector.load %arg1[%c0, %c0_0] : memref<32x256xf32, #tpu.memory_space<vmem>>, vector<32x256xf32>
    %c0_1 = arith.constant 0 : index
    %c0_2 = arith.constant 0 : index
    %1 = vector.load %arg2[%c0_1, %c0_2] : memref<256x128xf32, #tpu.memory_space<vmem>>, vector<256x128xf32>
    %cst = arith.constant dense<0.000000e+00> : vector<32x128xf32>
    %2 = tpu.matmul %0, %1, %cst {dimension_numbers = #tpu.dot_dimension_numbers<[1], [0], [0], [1], [0, 0, 1, 1], [], []>} : vector<32x256xf32>, vector<256x128xf32>, vector<32x128xf32> -> vector<32x128xf32>
    %c0_3 = arith.constant 0 : index
    %c0_4 = arith.constant 0 : index
    %3 = vector.load %arg3[%c0_3, %c0_4] : memref<2x128xf32, #tpu.memory_space<vmem>>, vector<1x128xf32>
    %4 = vector.broadcast %3 : vector<1x128xf32> to vector<32x128xf32>
    %5 = arith.mulf %2, %4 : vector<32x128xf32>
    %c1 = arith.constant 1 : index
    %c0_5 = arith.constant 0 : index
    %6 = vector.load %arg3[%c1, %c0_5] : memref<2x128xf32, #tpu.memory_space<vmem>>, vector<1x128xf32>
    %7 = vector.broadcast %6 : vector<1x128xf32> to vector<32x128xf32>
    %8 = arith.addf %5, %7 : vector<32x128xf32>
    %cst_6 = arith.constant 0.000000e+00 : f32
    %9 = vector.broadcast %cst_6 : f32 to vector<32x128xf32>
    %10 = arith.maximumf %8, %9 : vector<32x128xf32>
    %c0_7 = arith.constant 0 : index
    %c0_8 = arith.constant 0 : index
    %11 = vector.load %arg4[%c0_7, %c0_8] : memref<32x128xf32, #tpu.memory_space<vmem>>, vector<32x128xf32>
    tpu.vector_store %arg4[%c0_7, %c0_8], %10 {strides = array<i32>} : memref<32x128xf32, #tpu.memory_space<vmem>>, vector<32x128xf32>,
    return
  }
  func.func @transform_0(%arg0: i32) -> (i32, i32) {
    %c0_i32 = arith.constant 0 : i32
    %c0_i32_0 = arith.constant 0 : i32
    return %arg0, %c0_i32 : i32, i32
  }
  func.func @transform_1(%arg0: i32) -> (i32, i32) {
    %c0_i32 = arith.constant 0 : i32
    %c0_i32_0 = arith.constant 0 : i32
    %c0_i32_1 = arith.constant 0 : i32
    return %c0_i32, %c0_i32_0 : i32, i32
  }
  func.func @transform_2(%arg0: i32) -> (i32, i32) {
    %c0_i32 = arith.constant 0 : i32
    %c0_i32_0 = arith.constant 0 : i32
    %c0_i32_1 = arith.constant 0 : i32
    return %c0_i32, %c0_i32_0 : i32, i32
  }
  func.func @transform_3(%arg0: i32) -> (i32, i32) {
    %c0_i32 = arith.constant 0 : i32
    %c0_i32_0 = arith.constant 0 : i32
    return %arg0, %c0_i32 : i32, i32
  }
}

module attributes {stable_mosaic.version = 11 : i64} {
  func.func @_conv_stats_kernel(%arg0: i32, %arg1: memref<32x256xf32, #tpu.memory_space<vmem>>, %arg2: memref<256x128xf32, #tpu.memory_space<vmem>>, %arg3: memref<1x128xf32, #tpu.memory_space<vmem>>, %arg4: memref<1x128xf32, #tpu.memory_space<vmem>>, %arg5: memref<1x128xf32, #tpu.memory_space<vmem>>, %arg6: memref<2x128xf32, #tpu.memory_space<vmem>>, %arg7: memref<1x128xf32, #tpu.memory_space<vmem>>, %arg8: memref<1x128xf32, #tpu.memory_space<vmem>>) attributes {dimension_semantics = [#tpu.dimension_semantics<arbitrary>], iteration_bounds = array<i64: 1>, scalar_prefetch = 0 : i64, scratch_operands = 2 : i64, tpu.core_type = #tpu.core_type<tc>, window_params = [{transform_indices = @transform_0, window_bounds = array<i64: 32, 256>}, {pipeline_mode = #tpu.pipeline_mode<synchronous>, transform_indices = @transform_1, window_bounds = array<i64: 256, 128>}, {pipeline_mode = #tpu.pipeline_mode<synchronous>, transform_indices = @transform_2, window_bounds = array<i64: 1, 128>}, {pipeline_mode = #tpu.pipeline_mode<synchronous>, transform_indices = @transform_3, window_bounds = array<i64: 1, 128>}, {pipeline_mode = #tpu.pipeline_mode<synchronous>, transform_indices = @transform_4, window_bounds = array<i64: 1, 128>}, {pipeline_mode = #tpu.pipeline_mode<synchronous>, transform_indices = @transform_5, window_bounds = array<i64: 2, 128>}]} {
    %c0_i32 = arith.constant 0 : i32
    %0 = arith.cmpi eq, %arg0, %c0_i32 : i32
    %1 = arith.extui %0 : i1 to i32
    %c0_i32_0 = arith.constant 0 : i32
    %2 = arith.cmpi ne, %1, %c0_i32_0 : i32
    scf.if %2 {
      %cst_18 = arith.constant 0.000000e+00 : f32
      %23 = vector.broadcast %cst_18 : f32 to vector<1x128xf32>
      %c0_19 = arith.constant 0 : index
      %c0_20 = arith.constant 0 : index
      %24 = vector.load %arg7[%c0_19, %c0_20] : memref<1x128xf32, #tpu.memory_space<vmem>>, vector<1x128xf32>
      tpu.vector_store %arg7[%c0_19, %c0_20], %23 {strides = array<i32>} : memref<1x128xf32, #tpu.memory_space<vmem>>, vector<1x128xf32>,
      %cst_21 = arith.constant 0.000000e+00 : f32
      %25 = vector.broadcast %cst_21 : f32 to vector<1x128xf32>
      %c0_22 = arith.constant 0 : index
      %c0_23 = arith.constant 0 : index
      %26 = vector.load %arg8[%c0_22, %c0_23] : memref<1x128xf32, #tpu.memory_space<vmem>>, vector<1x128xf32>
      tpu.vector_store %arg8[%c0_22, %c0_23], %25 {strides = array<i32>} : memref<1x128xf32, #tpu.memory_space<vmem>>, vector<1x128xf32>,
    } else {
    }
    %c0 = arith.constant 0 : index
    %c0_1 = arith.constant 0 : index
    %3 = vector.load %arg1[%c0, %c0_1] : memref<32x256xf32, #tpu.memory_space<vmem>>, vector<32x256xf32>
    %c0_2 = arith.constant 0 : index
    %c0_3 = arith.constant 0 : index
    %4 = vector.load %arg2[%c0_2, %c0_3] : memref<256x128xf32, #tpu.memory_space<vmem>>, vector<256x128xf32>
    %cst = arith.constant dense<0.000000e+00> : vector<32x128xf32>
    %5 = tpu.matmul %3, %4, %cst {dimension_numbers = #tpu.dot_dimension_numbers<[1], [0], [0], [1], [0, 0, 1, 1], [], []>} : vector<32x256xf32>, vector<256x128xf32>, vector<32x128xf32> -> vector<32x128xf32>
    %c0_4 = arith.constant 0 : index
    %c0_5 = arith.constant 0 : index
    %6 = vector.load %arg3[%c0_4, %c0_5] : memref<1x128xf32, #tpu.memory_space<vmem>>, vector<1x128xf32>
    %7 = vector.broadcast %6 : vector<1x128xf32> to vector<32x128xf32>
    %8 = arith.addf %5, %7 : vector<32x128xf32>
    %c0_6 = arith.constant 0 : index
    %c0_7 = arith.constant 0 : index
    %9 = vector.load %arg7[%c0_6, %c0_7] : memref<1x128xf32, #tpu.memory_space<vmem>>, vector<1x128xf32>
    %cst_8 = arith.constant dense<0.000000e+00> : vector<128xf32>
    %10 = vector.multi_reduction <add>, %8, %cst_8 [0] : vector<32x128xf32> to vector<128xf32>
    %11 = vector.shape_cast %10 : vector<128xf32> to vector<1x128xf32>
    %12 = arith.addf %9, %11 : vector<1x128xf32>
    %c0_9 = arith.constant 0 : index
    %c0_10 = arith.constant 0 : index
    %13 = vector.load %arg7[%c0_9, %c0_10] : memref<1x128xf32, #tpu.memory_space<vmem>>, vector<1x128xf32>
    tpu.vector_store %arg7[%c0_9, %c0_10], %12 {strides = array<i32>} : memref<1x128xf32, #tpu.memory_space<vmem>>, vector<1x128xf32>,
    %c0_11 = arith.constant 0 : index
    %c0_12 = arith.constant 0 : index
    %14 = vector.load %arg8[%c0_11, %c0_12] : memref<1x128xf32, #tpu.memory_space<vmem>>, vector<1x128xf32>
    %15 = arith.mulf %8, %8 : vector<32x128xf32>
    %cst_13 = arith.constant dense<0.000000e+00> : vector<128xf32>
    %16 = vector.multi_reduction <add>, %15, %cst_13 [0] : vector<32x128xf32> to vector<128xf32>
    %17 = vector.shape_cast %16 : vector<128xf32> to vector<1x128xf32>
    %18 = arith.addf %14, %17 : vector<1x128xf32>
    %c0_14 = arith.constant 0 : index
    %c0_15 = arith.constant 0 : index
    %19 = vector.load %arg8[%c0_14, %c0_15] : memref<1x128xf32, #tpu.memory_space<vmem>>, vector<1x128xf32>
    tpu.vector_store %arg8[%c0_14, %c0_15], %18 {strides = array<i32>} : memref<1x128xf32, #tpu.memory_space<vmem>>, vector<1x128xf32>,
    %c0_i32_16 = arith.constant 0 : i32
    %20 = arith.cmpi eq, %arg0, %c0_i32_16 : i32
    %21 = arith.extui %20 : i1 to i32
    %c0_i32_17 = arith.constant 0 : i32
    %22 = arith.cmpi ne, %21, %c0_i32_17 : i32
    scf.if %22 {
      %c0_18 = arith.constant 0 : index
      %c0_19 = arith.constant 0 : index
      %23 = vector.load %arg7[%c0_18, %c0_19] : memref<1x128xf32, #tpu.memory_space<vmem>>, vector<1x128xf32>
      %cst_20 = arith.constant 3.125000e-02 : f32
      %24 = vector.broadcast %cst_20 : f32 to vector<1x128xf32>
      %25 = arith.mulf %23, %24 : vector<1x128xf32>
      %c0_21 = arith.constant 0 : index
      %c0_22 = arith.constant 0 : index
      %26 = vector.load %arg8[%c0_21, %c0_22] : memref<1x128xf32, #tpu.memory_space<vmem>>, vector<1x128xf32>
      %cst_23 = arith.constant 3.125000e-02 : f32
      %27 = vector.broadcast %cst_23 : f32 to vector<1x128xf32>
      %28 = arith.mulf %26, %27 : vector<1x128xf32>
      %29 = arith.mulf %25, %25 : vector<1x128xf32>
      %30 = arith.subf %28, %29 : vector<1x128xf32>
      %cst_24 = arith.constant 0.000000e+00 : f32
      %31 = vector.broadcast %cst_24 : f32 to vector<1x128xf32>
      %32 = arith.maximumf %30, %31 : vector<1x128xf32>
      %c0_25 = arith.constant 0 : index
      %c0_26 = arith.constant 0 : index
      %33 = vector.load %arg4[%c0_25, %c0_26] : memref<1x128xf32, #tpu.memory_space<vmem>>, vector<1x128xf32>
      %cst_27 = arith.constant 9.99999974E-6 : f32
      %34 = vector.broadcast %cst_27 : f32 to vector<1x128xf32>
      %35 = arith.addf %32, %34 : vector<1x128xf32>
      %36 = math.rsqrt %35 : vector<1x128xf32>
      %37 = arith.mulf %33, %36 : vector<1x128xf32>
      %c0_28 = arith.constant 0 : index
      %c0_29 = arith.constant 0 : index
      %38 = vector.load %arg5[%c0_28, %c0_29] : memref<1x128xf32, #tpu.memory_space<vmem>>, vector<1x128xf32>
      %c0_30 = arith.constant 0 : index
      %c0_31 = arith.constant 0 : index
      %39 = vector.load %arg3[%c0_30, %c0_31] : memref<1x128xf32, #tpu.memory_space<vmem>>, vector<1x128xf32>
      %40 = arith.subf %39, %25 : vector<1x128xf32>
      %41 = arith.mulf %40, %37 : vector<1x128xf32>
      %42 = arith.addf %38, %41 : vector<1x128xf32>
      %c0_32 = arith.constant 0 : index
      %c0_33 = arith.constant 0 : index
      %43 = vector.load %arg6[%c0_32, %c0_33] : memref<2x128xf32, #tpu.memory_space<vmem>>, vector<1x128xf32>
      tpu.vector_store %arg6[%c0_32, %c0_33], %37 {strides = array<i32>} : memref<2x128xf32, #tpu.memory_space<vmem>>, vector<1x128xf32>,
      %c1 = arith.constant 1 : index
      %c0_34 = arith.constant 0 : index
      %44 = vector.load %arg6[%c1, %c0_34] : memref<2x128xf32, #tpu.memory_space<vmem>>, vector<1x128xf32>
      tpu.vector_store %arg6[%c1, %c0_34], %42 {strides = array<i32>} : memref<2x128xf32, #tpu.memory_space<vmem>>, vector<1x128xf32>,
    } else {
    }
    return
  }
  func.func @transform_0(%arg0: i32) -> (i32, i32) {
    %c0_i32 = arith.constant 0 : i32
    %c0_i32_0 = arith.constant 0 : i32
    return %arg0, %c0_i32 : i32, i32
  }
  func.func @transform_1(%arg0: i32) -> (i32, i32) {
    %c0_i32 = arith.constant 0 : i32
    %c0_i32_0 = arith.constant 0 : i32
    %c0_i32_1 = arith.constant 0 : i32
    return %c0_i32, %c0_i32_0 : i32, i32
  }
  func.func @transform_2(%arg0: i32) -> (i32, i32) {
    %c0_i32 = arith.constant 0 : i32
    %c0_i32_0 = arith.constant 0 : i32
    %c0_i32_1 = arith.constant 0 : i32
    return %c0_i32, %c0_i32_0 : i32, i32
  }
  func.func @transform_3(%arg0: i32) -> (i32, i32) {
    %c0_i32 = arith.constant 0 : i32
    %c0_i32_0 = arith.constant 0 : i32
    %c0_i32_1 = arith.constant 0 : i32
    return %c0_i32, %c0_i32_0 : i32, i32
  }
  func.func @transform_4(%arg0: i32) -> (i32, i32) {
    %c0_i32 = arith.constant 0 : i32
    %c0_i32_0 = arith.constant 0 : i32
    %c0_i32_1 = arith.constant 0 : i32
    return %c0_i32, %c0_i32_0 : i32, i32
  }
  func.func @transform_5(%arg0: i32) -> (i32, i32) {
    %c0_i32 = arith.constant 0 : i32
    %c0_i32_0 = arith.constant 0 : i32
    %c0_i32_1 = arith.constant 0 : i32
    return %c0_i32, %c0_i32_0 : i32, i32
  }
}

module attributes {stable_mosaic.version = 11 : i64} {
  func.func @_linear_kernel(%arg0: i32, %arg1: memref<8x512xf32, #tpu.memory_space<vmem>>, %arg2: memref<512x128xf32, #tpu.memory_space<vmem>>, %arg3: memref<1x128xf32, #tpu.memory_space<vmem>>, %arg4: memref<8x128xf32, #tpu.memory_space<vmem>>) attributes {dimension_semantics = [#tpu.dimension_semantics<parallel>], iteration_bounds = array<i64: 1>, scalar_prefetch = 0 : i64, scratch_operands = 0 : i64, tpu.core_type = #tpu.core_type<tc>, window_params = [{transform_indices = @transform_0, window_bounds = array<i64: 8, 512>}, {pipeline_mode = #tpu.pipeline_mode<synchronous>, transform_indices = @transform_1, window_bounds = array<i64: 512, 128>}, {pipeline_mode = #tpu.pipeline_mode<synchronous>, transform_indices = @transform_2, window_bounds = array<i64: 1, 128>}, {transform_indices = @transform_3, window_bounds = array<i64: 8, 128>}]} {
    %c0 = arith.constant 0 : index
    %c0_0 = arith.constant 0 : index
    %0 = vector.load %arg1[%c0, %c0_0] : memref<8x512xf32, #tpu.memory_space<vmem>>, vector<8x512xf32>
    %c0_1 = arith.constant 0 : index
    %c0_2 = arith.constant 0 : index
    %1 = vector.load %arg2[%c0_1, %c0_2] : memref<512x128xf32, #tpu.memory_space<vmem>>, vector<512x128xf32>
    %cst = arith.constant dense<0.000000e+00> : vector<8x128xf32>
    %2 = tpu.matmul %0, %1, %cst {dimension_numbers = #tpu.dot_dimension_numbers<[1], [0], [0], [1], [0, 0, 1, 1], [], []>} : vector<8x512xf32>, vector<512x128xf32>, vector<8x128xf32> -> vector<8x128xf32>
    %c0_3 = arith.constant 0 : index
    %c0_4 = arith.constant 0 : index
    %3 = vector.load %arg3[%c0_3, %c0_4] : memref<1x128xf32, #tpu.memory_space<vmem>>, vector<1x128xf32>
    %4 = vector.broadcast %3 : vector<1x128xf32> to vector<8x128xf32>
    %5 = arith.addf %2, %4 : vector<8x128xf32>
    %c0_5 = arith.constant 0 : index
    %c0_6 = arith.constant 0 : index
    %6 = vector.load %arg4[%c0_5, %c0_6] : memref<8x128xf32, #tpu.memory_space<vmem>>, vector<8x128xf32>
    tpu.vector_store %arg4[%c0_5, %c0_6], %5 {strides = array<i32>} : memref<8x128xf32, #tpu.memory_space<vmem>>, vector<8x128xf32>,
    return
  }
  func.func @transform_0(%arg0: i32) -> (i32, i32) {
    %c0_i32 = arith.constant 0 : i32
    %c0_i32_0 = arith.constant 0 : i32
    return %arg0, %c0_i32 : i32, i32
  }
  func.func @transform_1(%arg0: i32) -> (i32, i32) {
    %c0_i32 = arith.constant 0 : i32
    %c0_i32_0 = arith.constant 0 : i32
    %c0_i32_1 = arith.constant 0 : i32
    return %c0_i32, %c0_i32_0 : i32, i32
  }
  func.func @transform_2(%arg0: i32) -> (i32, i32) {
    %c0_i32 = arith.constant 0 : i32
    %c0_i32_0 = arith.constant 0 : i32
    %c0_i32_1 = arith.constant 0 : i32
    return %c0_i32, %c0_i32_0 : i32, i32
  }
  func.func @transform_3(%arg0: i32) -> (i32, i32) {
    %c0_i32 = arith.constant 0 : i32
    %c0_i32_0 = arith.constant 0 : i32
    return %arg0, %c0_i32 : i32, i32
  }
}

</mosaic_0001>

<llo_original>
// kernel: convnet_forward.6
$region0: #{convnet_forward.6}
  #allocation0 [shape = 'u32[]', space=smem, size = 0x4, offset = 0x4, fixed_abs, tag = 'smem constant byte address 0x4 - core index']
  #allocation1 [shape = 'u32[144,128]{1,0:T(1,128)}', space=vmem, size = 0x12000, scoped, tag = 'internal scratch']
  %s0 = inlined_call_operand.vmem [shape: f32[128,128], index: 0, kind: input, shape index: {}]
  %s1 = inlined_call_operand.vmem [shape: f32[128,128], index: 1, kind: input, shape index: {}]
  %s2 = inlined_call_operand.vmem [shape: f32[2,128], index: 2, kind: input, shape index: {}]
  %s3 = inlined_call_operand.vmem [shape: f32[128,128], index: 3, kind: output, shape index: {}]
  %s4 = sld [smem:[#allocation0]]
  $region22: #{convnet_forward.6} parent=0
    _
  %s6 = ssub.s32 1, %s4
  %s7 = scalar_select 0, %s6, %s4
  // Predicated region
  $region2: #{convnet_forward.6} parent=0 // pred_check
    _
  $region3: #{convnet_forward.6} parent=0 // pred_check_branch
    %9 = sbr.rel (0) target = $region5
  $region4: #{convnet_forward.6} parent=0 // pred_region
    _
  $region5: #{convnet_forward.6} parent=0 // pred_fallthru
    _
  // Predicated region
  $region6: #{convnet_forward.6} parent=0 // pred_check
    _
  $region7: #{convnet_forward.6} parent=0 // pred_check_branch
    %11 = sbr.rel (0) target = $region9
  $region8: #{convnet_forward.6} parent=0 // pred_region
    _
  $region9: #{convnet_forward.6} parent=0 // pred_fallthru
    _
  // Predicated region
  $region10: #{convnet_forward.6} parent=0 // pred_check
    _
  $region11: #{convnet_forward.6} parent=0 // pred_check_branch
    %13 = sbr.rel (0) target = $region13
  $region12: #{convnet_forward.6} parent=0 // pred_region
    _
  $region13: #{convnet_forward.6} parent=0 // pred_fallthru
    _
  %v14 = vld [vmem:[%s0] sm:$0xff]
  %v15 = vld [vmem:[%s0 + $0x8] sm:$0xff]
  %v16 = vld [vmem:[%s0 + $0x10] sm:$0xff]
  %v17 = vld [vmem:[%s0 + $0x18] sm:$0xff]
  %v18 = vld [vmem:[%s0 + $0x20] sm:$0xff]
  %v19 = vld [vmem:[%s0 + $0x28] sm:$0xff]
  %v20 = vld [vmem:[%s0 + $0x30] sm:$0xff]
  %v21 = vld [vmem:[%s0 + $0x38] sm:$0xff]
  %v22 = vld [vmem:[%s0 + $0x40] sm:$0xff]
  %v23 = vld [vmem:[%s0 + $0x48] sm:$0xff]
  %v24 = vld [vmem:[%s0 + $0x50] sm:$0xff]
  %v25 = vld [vmem:[%s0 + $0x58] sm:$0xff]
  %v26 = vld [vmem:[%s0 + $0x60] sm:$0xff]
  %v27 = vld [vmem:[%s0 + $0x68] sm:$0xff]
  %v28 = vld [vmem:[%s0 + $0x70] sm:$0xff]
  %v29 = vld [vmem:[%s0 + $0x78] sm:$0xff]
  %v30 = vld [vmem:[%s1] sm:$0xff]
  %v31 = vld [vmem:[%s1 + $0x8] sm:$0xff]
  %v32 = vld [vmem:[%s1 + $0x10] sm:$0xff]
  %v33 = vld [vmem:[%s1 + $0x18] sm:$0xff]
  %v34 = vld [vmem:[%s1 + $0x20] sm:$0xff]
  %v35 = vld [vmem:[%s1 + $0x28] sm:$0xff]
  %v36 = vld [vmem:[%s1 + $0x30] sm:$0xff]
  %v37 = vld [vmem:[%s1 + $0x38] sm:$0xff]
  %v38 = vld [vmem:[%s1 + $0x40] sm:$0xff]
  %v39 = vld [vmem:[%s1 + $0x48] sm:$0xff]
  %v40 = vld [vmem:[%s1 + $0x50] sm:$0xff]
  %v41 = vld [vmem:[%s1 + $0x58] sm:$0xff]
  %v42 = vld [vmem:[%s1 + $0x60] sm:$0xff]
  %v43 = vld [vmem:[%s1 + $0x68] sm:$0xff]
  %v44 = vld [vmem:[%s1 + $0x70] sm:$0xff]
  %v45 = vld [vmem:[%s1 + $0x78] sm:$0xff]
  %46 = vmatprep.subr.mxu0 0.0
  %47 = vmatpush1.msra.mxu0 %v30
  %48 = vmatprep.subr.mxu0 0.0
  %49 = vmatpush1.msra.mxu0 %v31
  %50 = vmatprep.subr.mxu0 0.0
  %51 = vmatpush1.msra.mxu0 %v32
  %52 = vmatprep.subr.mxu0 0.0
  %53 = vmatpush1.msra.mxu0 %v33
  %54 = vmatprep.subr.mxu0 0.0
  %55 = vmatpush1.msra.mxu0 %v34
  %56 = vmatprep.subr.mxu0 0.0
  %57 = vmatpush1.msra.mxu0 %v35
  %58 = vmatprep.subr.mxu0 0.0
  %59 = vmatpush1.msra.mxu0 %v36
  %60 = vmatprep.subr.mxu0 0.0
  %61 = vmatpush1.msra.mxu0 %v37
  %62 = vmatprep.subr.mxu0 0.0
  %63 = vmatpush1.msra.mxu0 %v38
  %64 = vmatprep.subr.mxu0 0.0
  %65 = vmatpush1.msra.mxu0 %v39
  %66 = vmatprep.subr.mxu0 0.0
  %67 = vmatpush1.msra.mxu0 %v40
  %68 = vmatprep.subr.mxu0 0.0
  %69 = vmatpush1.msra.mxu0 %v41
  %70 = vmatprep.subr.mxu0 0.0
  %71 = vmatpush1.msra.mxu0 %v42
  %72 = vmatprep.subr.mxu0 0.0
  %73 = vmatpush1.msra.mxu0 %v43
  %74 = vmatprep.subr.mxu0 0.0
  %75 = vmatpush1.msra.mxu0 %v44
  %76 = vmatprep.subr.mxu0 0.0
  %77 = vmatpush1.msra.mxu0 %v45
  %78 = vmatprep.subr.mxu0 0.0
  %79 = vmatpush1.msra.mxu0 0.0
  %80 = vmatprep.subr.mxu0 0.0
  %81 = vmatpush1.msra.mxu0 0.0
  %82 = vmatprep.subr.mxu0 0.0
  %83 = vmatpush1.msra.mxu0 0.0
  %84 = vmatprep.subr.mxu0 0.0
  %85 = vmatpush1.msra.mxu0 0.0
  %86 = vmatprep.subr.mxu0 0.0
  %87 = vmatpush1.msra.mxu0 0.0
  %88 = vmatprep.subr.mxu0 0.0
  %89 = vmatpush1.msra.mxu0 0.0
  %90 = vmatprep.subr.mxu0 0.0
  %91 = vmatpush1.msra.mxu0 0.0
  %92 = vmatprep.subr.mxu0 0.0
  %93 = vmatpush1.msra.mxu0 0.0
  %94 = vmatprep.subr.mxu0 0.0
  %95 = vmatpush1.msra.mxu0 0.0
  %96 = vmatprep.subr.mxu0 0.0
  %97 = vmatpush1.msra.mxu0 0.0
  %98 = vmatprep.subr.mxu0 0.0
  %99 = vmatpush1.msra.mxu0 0.0
  %100 = vmatprep.subr.mxu0 0.0
  %101 = vmatpush1.msra.mxu0 0.0
  %102 = vmatprep.subr.mxu0 0.0
  %103 = vmatpush1.msra.mxu0 0.0
  %104 = vmatprep.subr.mxu0 0.0
  %105 = vmatpush1.msra.mxu0 0.0
  %106 = vmatprep.subr.mxu0 0.0
  %107 = vmatpush1.msra.mxu0 0.0
  %108 = vmatprep.subr.mxu0 0.0
  %109 = vmatpush1.msra.mxu0 0.0
  %110 = vmatprep.mubr.f32.mxu0 0.0
  %111 = vmatmul.mubr.f32.gmra.mrb[0].mxu0 %v14
  %v112 = vpop.f32.mrb[0].mxu0
  %v113 = vadd.f32 0.0, %v112
  %v114 = vpop.f32.mrb[0].mxu0
  %115 = vmatprep.mubr.f32.mxu0 0.0
  %116 = vmatmul.mubr.f32.gmra.mrb[0].mxu0 %v15
  %v117 = vpop.f32.mrb[0].mxu0
  %v118 = vadd.f32 0.0, %v117
  %v119 = vpop.f32.mrb[0].mxu0
  %120 = vmatprep.mubr.f32.mxu0 0.0
  %121 = vmatmul.mubr.f32.gmra.mrb[0].mxu0 %v16
  %v122 = vpop.f32.mrb[0].mxu0
  %v123 = vadd.f32 0.0, %v122
  %v124 = vpop.f32.mrb[0].mxu0
  %125 = vmatprep.mubr.f32.mxu0 0.0
  %126 = vmatmul.mubr.f32.gmra.mrb[0].mxu0 %v17
  %v127 = vpop.f32.mrb[0].mxu0
  %v128 = vadd.f32 0.0, %v127
  %v129 = vpop.f32.mrb[0].mxu0
  %130 = vmatprep.mubr.f32.mxu0 0.0
  %131 = vmatmul.mubr.f32.gmra.mrb[0].mxu0 %v18
  %v132 = vpop.f32.mrb[0].mxu0
  %v133 = vadd.f32 0.0, %v132
  %v134 = vpop.f32.mrb[0].mxu0
  %135 = vmatprep.mubr.f32.mxu0 0.0
  %136 = vmatmul.mubr.f32.gmra.mrb[0].mxu0 %v19
  %v137 = vpop.f32.mrb[0].mxu0
  %v138 = vadd.f32 0.0, %v137
  %v139 = vpop.f32.mrb[0].mxu0
  %140 = vmatprep.mubr.f32.mxu0 0.0
  %141 = vmatmul.mubr.f32.gmra.mrb[0].mxu0 %v20
  %v142 = vpop.f32.mrb[0].mxu0
  %v143 = vadd.f32 0.0, %v142
  %v144 = vpop.f32.mrb[0].mxu0
  %145 = vmatprep.mubr.f32.mxu0 0.0
  %146 = vmatmul.mubr.f32.gmra.mrb[0].mxu0 %v21
  %v147 = vpop.f32.mrb[0].mxu0
  %v148 = vadd.f32 0.0, %v147
  %v149 = vpop.f32.mrb[0].mxu0
  %150 = vmatprep.mubr.f32.mxu0 0.0
  %151 = vmatmul.mubr.f32.gmra.mrb[0].mxu0 %v22
  %v152 = vpop.f32.mrb[0].mxu0
  %v153 = vadd.f32 0.0, %v152
  %v154 = vpop.f32.mrb[0].mxu0
  %155 = vmatprep.mubr.f32.mxu0 0.0
  %156 = vmatmul.mubr.f32.gmra.mrb[0].mxu0 %v23
  %v157 = vpop.f32.mrb[0].mxu0
  %v158 = vadd.f32 0.0, %v157
  %v159 = vpop.f32.mrb[0].mxu0
  %160 = vmatprep.mubr.f32.mxu0 0.0
  %161 = vmatmul.mubr.f32.gmra.mrb[0].mxu0 %v24
  %v162 = vpop.f32.mrb[0].mxu0
  %v163 = vadd.f32 0.0, %v162
  %v164 = vpop.f32.mrb[0].mxu0
  %165 = vmatprep.mubr.f32.mxu0 0.0
  %166 = vmatmul.mubr.f32.gmra.mrb[0].mxu0 %v25
  %v167 = vpop.f32.mrb[0].mxu0
  %v168 = vadd.f32 0.0, %v167
  %v169 = vpop.f32.mrb[0].mxu0
  %170 = vmatprep.mubr.f32.mxu0 0.0
  %171 = vmatmul.mubr.f32.gmra.mrb[0].mxu0 %v26
  %v172 = vpop.f32.mrb[0].mxu0
  %v173 = vadd.f32 0.0, %v172
  %v174 = vpop.f32.mrb[0].mxu0
  %175 = vmatprep.mubr.f32.mxu0 0.0
  %176 = vmatmul.mubr.f32.gmra.mrb[0].mxu0 %v27
  %v177 = vpop.f32.mrb[0].mxu0
  %v178 = vadd.f32 0.0, %v177
  %v179 = vpop.f32.mrb[0].mxu0
  %180 = vmatprep.mubr.f32.mxu0 0.0
  %181 = vmatmul.mubr.f32.gmra.mrb[0].mxu0 %v28
  %v182 = vpop.f32.mrb[0].mxu0
  %v183 = vadd.f32 0.0, %v182
  %v184 = vpop.f32.mrb[0].mxu0
  %185 = vmatprep.mubr.f32.mxu0 0.0
  %186 = vmatmul.mubr.f32.gmra.mrb[0].mxu0 %v29
  %v187 = vpop.f32.mrb[0].mxu0
  %v188 = vadd.f32 0.0, %v187
  %v189 = vpop.f32.mrb[0].mxu0
  %190 = vdwg.mxu0
  %v191 = vld [vmem:[%s2] sm:$0x1]
  %v192 = vlaneseq
  %v193 = vshrl.u32 %v192, 7
  %v194 = vsub.s32 0, %v193
  %v195 = vrot.slane %v191, %v194
  %v196 = vmul.f32 %v113, %v195
  %v197 = vmul.f32 %v118, %v195
  %v198 = vmul.f32 %v123, %v195
  %v199 = vmul.f32 %v128, %v195
  %v200 = vmul.f32 %v133, %v195
  %v201 = vmul.f32 %v138, %v195
  %v202 = vmul.f32 %v143, %v195
  %v203 = vmul.f32 %v148, %v195
  %v204 = vmul.f32 %v153, %v195
  %v205 = vmul.f32 %v158, %v195
  %v206 = vmul.f32 %v163, %v195
  %v207 = vmul.f32 %v168, %v195
  %v208 = vmul.f32 %v173, %v195
  %v209 = vmul.f32 %v178, %v195
  %v210 = vmul.f32 %v183, %v195
  %v211 = vmul.f32 %v188, %v195
  %v212 = vld [vmem:[%s2 + $0x1] sm:$0x1]
  %v213 = vlaneseq
  %v214 = vshrl.u32 %v213, 7
  %v215 = vsub.s32 0, %v214
  %v216 = vrot.slane %v212, %v215
  %v217 = vadd.f32 %v196, %v216
  %v218 = vadd.f32 %v197, %v216
  %v219 = vadd.f32 %v198, %v216
  %v220 = vadd.f32 %v199, %v216
  %v221 = vadd.f32 %v200, %v216
  %v222 = vadd.f32 %v201, %v216
  %v223 = vadd.f32 %v202, %v216
  %v224 = vadd.f32 %v203, %v216
  %v225 = vadd.f32 %v204, %v216
  %v226 = vadd.f32 %v205, %v216
  %v227 = vadd.f32 %v206, %v216
  %v228 = vadd.f32 %v207, %v216
  %v229 = vadd.f32 %v208, %v216
  %v230 = vadd.f32 %v209, %v216
  %v231 = vadd.f32 %v210, %v216
  %v232 = vadd.f32 %v211, %v216
  %v233 = vmax.f32 %v217, 0.0
  %v234 = vmax.f32 %v218, 0.0
  %v235 = vmax.f32 %v219, 0.0
  %v236 = vmax.f32 %v220, 0.0
  %v237 = vmax.f32 %v221, 0.0
  %v238 = vmax.f32 %v222, 0.0
  %v239 = vmax.f32 %v223, 0.0
  %v240 = vmax.f32 %v224, 0.0
  %v241 = vmax.f32 %v225, 0.0
  %v242 = vmax.f32 %v226, 0.0
  %v243 = vmax.f32 %v227, 0.0
  %v244 = vmax.f32 %v228, 0.0
  %v245 = vmax.f32 %v229, 0.0
  %v246 = vmax.f32 %v230, 0.0
  %v247 = vmax.f32 %v231, 0.0
  %v248 = vmax.f32 %v232, 0.0
  %249 = vst [vmem:[%s3] sm:$0xff] %v233
  %250 = vst [vmem:[%s3 + $0x8] sm:$0xff] %v234
  %251 = vst [vmem:[%s3 + $0x10] sm:$0xff] %v235
  %252 = vst [vmem:[%s3 + $0x18] sm:$0xff] %v236
  %253 = vst [vmem:[%s3 + $0x20] sm:$0xff] %v237
  %254 = vst [vmem:[%s3 + $0x28] sm:$0xff] %v238
  %255 = vst [vmem:[%s3 + $0x30] sm:$0xff] %v239
  %256 = vst [vmem:[%s3 + $0x38] sm:$0xff] %v240
  %257 = vst [vmem:[%s3 + $0x40] sm:$0xff] %v241
  %258 = vst [vmem:[%s3 + $0x48] sm:$0xff] %v242
  %259 = vst [vmem:[%s3 + $0x50] sm:$0xff] %v243
  %260 = vst [vmem:[%s3 + $0x58] sm:$0xff] %v244
  %261 = vst [vmem:[%s3 + $0x60] sm:$0xff] %v245
  %262 = vst [vmem:[%s3 + $0x68] sm:$0xff] %v246
  %263 = vst [vmem:[%s3 + $0x70] sm:$0xff] %v247
  %264 = vst [vmem:[%s3 + $0x78] sm:$0xff] %v248
  // Predicated region
  $region14: #{convnet_forward.6} parent=0 // pred_check
    _
  $region15: #{convnet_forward.6} parent=0 // pred_check_branch
    %266 = sbr.rel (0) target = $region17
  $region16: #{convnet_forward.6} parent=0 // pred_region
    _
  $region17: #{convnet_forward.6} parent=0 // pred_fallthru
    _
  // Predicated region
  $region18: #{convnet_forward.6} parent=0 // pred_check
    _
  $region19: #{convnet_forward.6} parent=0 // pred_check_branch
    %268 = sbr.rel (0) target = $region21
  $region20: #{convnet_forward.6} parent=0 // pred_region
    _
  $region21: #{convnet_forward.6} parent=0 // pred_fallthru
    _

// kernel: convnet_forward.5
$region0: #{convnet_forward.5}
  #allocation0 [shape = 'u32[]', space=smem, size = 0x4, offset = 0x4, fixed_abs, tag = 'smem constant byte address 0x4 - core index']
  #allocation1 [shape = 'u32[144,128]{1,0:T(1,128)}', space=vmem, size = 0x12000, scoped, tag = 'internal scratch']
  #allocation2 [shape = 'f32[1,128]{1,0:T(1,128)}', space=vmem, size = 0x200, scoped, tag = 'scratch operand']
  #allocation3 [shape = 'f32[1,128]{1,0:T(1,128)}', space=vmem, size = 0x200, scoped, tag = 'scratch operand']
  %s0 = inlined_call_operand.vmem [shape: f32[128,128], index: 0, kind: input, shape index: {}]
  %s1 = inlined_call_operand.vmem [shape: f32[128,128], index: 1, kind: input, shape index: {}]
  %s2 = inlined_call_operand.vmem [shape: f32[1,128], index: 2, kind: input, shape index: {}]
  %s3 = inlined_call_operand.vmem [shape: f32[1,128], index: 3, kind: input, shape index: {}]
  %s4 = inlined_call_operand.vmem [shape: f32[1,128], index: 4, kind: input, shape index: {}]
  %s5 = inlined_call_operand.vmem [shape: f32[2,128], index: 5, kind: output, shape index: {}]
  %s6 = sld [smem:[#allocation0]]
  $region38: #{convnet_forward.5} parent=0
    _
  %s8 = ssub.s32 1, %s6
  %s9 = scalar_select 0, %s8, %s6
  // Predicated region
  $region2: #{convnet_forward.5} parent=0 // pred_check
    _
  $region3: #{convnet_forward.5} parent=0 // pred_check_branch
    %11 = sbr.rel (0) target = $region5
  $region4: #{convnet_forward.5} parent=0 // pred_region
    _
  $region5: #{convnet_forward.5} parent=0 // pred_fallthru
    _
  // Predicated region
  $region6: #{convnet_forward.5} parent=0 // pred_check
    _
  $region7: #{convnet_forward.5} parent=0 // pred_check_branch
    %13 = sbr.rel (0) target = $region9
  $region8: #{convnet_forward.5} parent=0 // pred_region
    _
  $region9: #{convnet_forward.5} parent=0 // pred_fallthru
    _
  // Predicated region
  $region10: #{convnet_forward.5} parent=0 // pred_check
    _
  $region11: #{convnet_forward.5} parent=0 // pred_check_branch
    %15 = sbr.rel (0) target = $region13
  $region12: #{convnet_forward.5} parent=0 // pred_region
    _
  $region13: #{convnet_forward.5} parent=0 // pred_fallthru
    _
  // Predicated region
  $region14: #{convnet_forward.5} parent=0 // pred_check
    _
  $region15: #{convnet_forward.5} parent=0 // pred_check_branch
    %17 = sbr.rel (0) target = $region17
  $region16: #{convnet_forward.5} parent=0 // pred_region
    _
  $region17: #{convnet_forward.5} parent=0 // pred_fallthru
    _
  // Predicated region
  $region18: #{convnet_forward.5} parent=0 // pred_check
    _
  $region19: #{convnet_forward.5} parent=0 // pred_check_branch
    %19 = sbr.rel (0) target = $region21
  $region20: #{convnet_forward.5} parent=0 // pred_region
    _
  $region21: #{convnet_forward.5} parent=0 // pred_fallthru
    _
  %p20 = scmp.eq.s32.totalorder 0, 0
  // Predicated region
  $region22: #{convnet_forward.5} parent=0 // pred_check
    %p21 = pneg %p20
  $region23: #{convnet_forward.5} parent=0 // pred_check_branch
    %23 = sbr.rel (%p21) target = $region25
  $region24: #{convnet_forward.5} parent=0 // pred_region
    %24 = vst [vmem:[#allocation2] sm:$0x1] 0.0
    %25 = vst [vmem:[#allocation3] sm:$0x1] 0.0
  $region25: #{convnet_forward.5} parent=0 // pred_fallthru
    _
  %v26 = vld [vmem:[%s0] sm:$0xff]
  %v27 = vld [vmem:[%s0 + $0x8] sm:$0xff]
  %v28 = vld [vmem:[%s0 + $0x10] sm:$0xff]
  %v29 = vld [vmem:[%s0 + $0x18] sm:$0xff]
  %v30 = vld [vmem:[%s0 + $0x20] sm:$0xff]
  %v31 = vld [vmem:[%s0 + $0x28] sm:$0xff]
  %v32 = vld [vmem:[%s0 + $0x30] sm:$0xff]
  %v33 = vld [vmem:[%s0 + $0x38] sm:$0xff]
  %v34 = vld [vmem:[%s0 + $0x40] sm:$0xff]
  %v35 = vld [vmem:[%s0 + $0x48] sm:$0xff]
  %v36 = vld [vmem:[%s0 + $0x50] sm:$0xff]
  %v37 = vld [vmem:[%s0 + $0x58] sm:$0xff]
  %v38 = vld [vmem:[%s0 + $0x60] sm:$0xff]
  %v39 = vld [vmem:[%s0 + $0x68] sm:$0xff]
  %v40 = vld [vmem:[%s0 + $0x70] sm:$0xff]
  %v41 = vld [vmem:[%s0 + $0x78] sm:$0xff]
  %v42 = vld [vmem:[%s1] sm:$0xff]
  %v43 = vld [vmem:[%s1 + $0x8] sm:$0xff]
  %v44 = vld [vmem:[%s1 + $0x10] sm:$0xff]
  %v45 = vld [vmem:[%s1 + $0x18] sm:$0xff]
  %v46 = vld [vmem:[%s1 + $0x20] sm:$0xff]
  %v47 = vld [vmem:[%s1 + $0x28] sm:$0xff]
  %v48 = vld [vmem:[%s1 + $0x30] sm:$0xff]
  %v49 = vld [vmem:[%s1 + $0x38] sm:$0xff]
  %v50 = vld [vmem:[%s1 + $0x40] sm:$0xff]
  %v51 = vld [vmem:[%s1 + $0x48] sm:$0xff]
  %v52 = vld [vmem:[%s1 + $0x50] sm:$0xff]
  %v53 = vld [vmem:[%s1 + $0x58] sm:$0xff]
  %v54 = vld [vmem:[%s1 + $0x60] sm:$0xff]
  %v55 = vld [vmem:[%s1 + $0x68] sm:$0xff]
  %v56 = vld [vmem:[%s1 + $0x70] sm:$0xff]
  %v57 = vld [vmem:[%s1 + $0x78] sm:$0xff]
  %v58 = vld [vmem:[%s2] sm:$0x1]
  %v60 = vlaneseq
  %v61 = vshrl.u32 %v60, 7
  %v62 = vsub.s32 0, %v61
  %v63 = vrot.slane %v58, %v62
  %65 = vmatprep.subr.mxu0 0.0
  %66 = vmatpush1.msra.mxu0 %v42
  %67 = vmatprep.subr.mxu0 0.0
  %68 = vmatpush1.msra.mxu0 %v43
  %69 = vmatprep.subr.mxu0 0.0
  %70 = vmatpush1.msra.mxu0 %v44
  %71 = vmatprep.subr.mxu0 0.0
  %72 = vmatpush1.msra.mxu0 %v45
  %73 = vmatprep.subr.mxu0 0.0
  %74 = vmatpush1.msra.mxu0 %v46
  %75 = vmatprep.subr.mxu0 0.0
  %76 = vmatpush1.msra.mxu0 %v47
  %77 = vmatprep.subr.mxu0 0.0
  %78 = vmatpush1.msra.mxu0 %v48
  %79 = vmatprep.subr.mxu0 0.0
  %80 = vmatpush1.msra.mxu0 %v49
  %81 = vmatprep.subr.mxu0 0.0
  %82 = vmatpush1.msra.mxu0 %v50
  %83 = vmatprep.subr.mxu0 0.0
  %84 = vmatpush1.msra.mxu0 %v51
  %85 = vmatprep.subr.mxu0 0.0
  %86 = vmatpush1.msra.mxu0 %v52
  %87 = vmatprep.subr.mxu0 0.0
  %88 = vmatpush1.msra.mxu0 %v53
  %89 = vmatprep.subr.mxu0 0.0
  %90 = vmatpush1.msra.mxu0 %v54
  %91 = vmatprep.subr.mxu0 0.0
  %92 = vmatpush1.msra.mxu0 %v55
  %93 = vmatprep.subr.mxu0 0.0
  %94 = vmatpush1.msra.mxu0 %v56
  %95 = vmatprep.subr.mxu0 0.0
  %96 = vmatpush1.msra.mxu0 %v57
  %97 = vmatprep.subr.mxu0 0.0
  %98 = vmatpush1.msra.mxu0 0.0
  %99 = vmatprep.subr.mxu0 0.0
  %100 = vmatpush1.msra.mxu0 0.0
  %101 = vmatprep.subr.mxu0 0.0
  %102 = vmatpush1.msra.mxu0 0.0
  %103 = vmatprep.subr.mxu0 0.0
  %104 = vmatpush1.msra.mxu0 0.0
  %105 = vmatprep.subr.mxu0 0.0
  %106 = vmatpush1.msra.mxu0 0.0
  %107 = vmatprep.subr.mxu0 0.0
  %108 = vmatpush1.msra.mxu0 0.0
  %109 = vmatprep.subr.mxu0 0.0
  %110 = vmatpush1.msra.mxu0 0.0
  %111 = vmatprep.subr.mxu0 0.0
  %112 = vmatpush1.msra.mxu0 0.0
  %113 = vmatprep.subr.mxu0 0.0
  %114 = vmatpush1.msra.mxu0 0.0
  %115 = vmatprep.subr.mxu0 0.0
  %116 = vmatpush1.msra.mxu0 0.0
  %117 = vmatprep.subr.mxu0 0.0
  %118 = vmatpush1.msra.mxu0 0.0
  %119 = vmatprep.subr.mxu0 0.0
  %120 = vmatpush1.msra.mxu0 0.0
  %121 = vmatprep.subr.mxu0 0.0
  %122 = vmatpush1.msra.mxu0 0.0
  %123 = vmatprep.subr.mxu0 0.0
  %124 = vmatpush1.msra.mxu0 0.0
  %125 = vmatprep.subr.mxu0 0.0
  %126 = vmatpush1.msra.mxu0 0.0
  %127 = vmatprep.subr.mxu0 0.0
  %128 = vmatpush1.msra.mxu0 0.0
  %129 = vmatprep.mubr.f32.mxu0 0.0
  %130 = vmatmul.mubr.f32.gmra.mrb[0].mxu0 %v26
  %v131 = vpop.f32.mrb[0].mxu0
  %v132 = vadd.f32 %v63, %v131
  %v133 = vpop.f32.mrb[0].mxu0
  %134 = vmatprep.mubr.f32.mxu0 0.0
  %135 = vmatmul.mubr.f32.gmra.mrb[0].mxu0 %v27
  %v136 = vpop.f32.mrb[0].mxu0
  %v137 = vadd.f32 %v63, %v136
  %v138 = vpop.f32.mrb[0].mxu0
  %139 = vmatprep.mubr.f32.mxu0 0.0
  %140 = vmatmul.mubr.f32.gmra.mrb[0].mxu0 %v28
  %v141 = vpop.f32.mrb[0].mxu0
  %v142 = vadd.f32 %v63, %v141
  %v143 = vpop.f32.mrb[0].mxu0
  %144 = vmatprep.mubr.f32.mxu0 0.0
  %145 = vmatmul.mubr.f32.gmra.mrb[0].mxu0 %v29
  %v146 = vpop.f32.mrb[0].mxu0
  %v147 = vadd.f32 %v63, %v146
  %v148 = vpop.f32.mrb[0].mxu0
  %149 = vmatprep.mubr.f32.mxu0 0.0
  %150 = vmatmul.mubr.f32.gmra.mrb[0].mxu0 %v30
  %v151 = vpop.f32.mrb[0].mxu0
  %v152 = vadd.f32 %v63, %v151
  %v153 = vpop.f32.mrb[0].mxu0
  %154 = vmatprep.mubr.f32.mxu0 0.0
  %155 = vmatmul.mubr.f32.gmra.mrb[0].mxu0 %v31
  %v156 = vpop.f32.mrb[0].mxu0
  %v157 = vadd.f32 %v63, %v156
  %v158 = vpop.f32.mrb[0].mxu0
  %159 = vmatprep.mubr.f32.mxu0 0.0
  %160 = vmatmul.mubr.f32.gmra.mrb[0].mxu0 %v32
  %v161 = vpop.f32.mrb[0].mxu0
  %v162 = vadd.f32 %v63, %v161
  %v163 = vpop.f32.mrb[0].mxu0
  %164 = vmatprep.mubr.f32.mxu0 0.0
  %165 = vmatmul.mubr.f32.gmra.mrb[0].mxu0 %v33
  %v166 = vpop.f32.mrb[0].mxu0
  %v167 = vadd.f32 %v63, %v166
  %v168 = vpop.f32.mrb[0].mxu0
  %169 = vmatprep.mubr.f32.mxu0 0.0
  %170 = vmatmul.mubr.f32.gmra.mrb[0].mxu0 %v34
  %v171 = vpop.f32.mrb[0].mxu0
  %v172 = vadd.f32 %v63, %v171
  %v173 = vpop.f32.mrb[0].mxu0
  %174 = vmatprep.mubr.f32.mxu0 0.0
  %175 = vmatmul.mubr.f32.gmra.mrb[0].mxu0 %v35
  %v176 = vpop.f32.mrb[0].mxu0
  %v177 = vadd.f32 %v63, %v176
  %v178 = vpop.f32.mrb[0].mxu0
  %179 = vmatprep.mubr.f32.mxu0 0.0
  %180 = vmatmul.mubr.f32.gmra.mrb[0].mxu0 %v36
  %v181 = vpop.f32.mrb[0].mxu0
  %v182 = vadd.f32 %v63, %v181
  %v183 = vpop.f32.mrb[0].mxu0
  %184 = vmatprep.mubr.f32.mxu0 0.0
  %185 = vmatmul.mubr.f32.gmra.mrb[0].mxu0 %v37
  %v186 = vpop.f32.mrb[0].mxu0
  %v187 = vadd.f32 %v63, %v186
  %v188 = vpop.f32.mrb[0].mxu0
  %189 = vmatprep.mubr.f32.mxu0 0.0
  %190 = vmatmul.mubr.f32.gmra.mrb[0].mxu0 %v38
  %v191 = vpop.f32.mrb[0].mxu0
  %v192 = vadd.f32 %v63, %v191
  %v193 = vpop.f32.mrb[0].mxu0
  %194 = vmatprep.mubr.f32.mxu0 0.0
  %195 = vmatmul.mubr.f32.gmra.mrb[0].mxu0 %v39
  %v196 = vpop.f32.mrb[0].mxu0
  %v197 = vadd.f32 %v63, %v196
  %v198 = vpop.f32.mrb[0].mxu0
  %199 = vmatprep.mubr.f32.mxu0 0.0
  %200 = vmatmul.mubr.f32.gmra.mrb[0].mxu0 %v40
  %v201 = vpop.f32.mrb[0].mxu0
  %v202 = vadd.f32 %v63, %v201
  %v203 = vpop.f32.mrb[0].mxu0
  %204 = vmatprep.mubr.f32.mxu0 0.0
  %205 = vmatmul.mubr.f32.gmra.mrb[0].mxu0 %v41
  %v206 = vpop.f32.mrb[0].mxu0
  %v207 = vadd.f32 %v63, %v206
  %v208 = vpop.f32.mrb[0].mxu0
  %209 = vdwg.mxu0
  %v210 = vld [vmem:[#allocation2] sm:$0x1]
  %v211 = vadd.f32 %v132, %v137
  %v212 = vadd.f32 %v211, %v142
  %v213 = vadd.f32 %v212, %v147
  %v214 = vadd.f32 %v213, %v152
  %v215 = vadd.f32 %v214, %v157
  %v216 = vadd.f32 %v215, %v162
  %v217 = vadd.f32 %v216, %v167
  %v218 = vadd.f32 %v217, %v172
  %v219 = vadd.f32 %v218, %v177
  %v220 = vadd.f32 %v219, %v182
  %v221 = vadd.f32 %v220, %v187
  %v222 = vadd.f32 %v221, %v192
  %v223 = vadd.f32 %v222, %v197
  %v224 = vadd.f32 %v223, %v202
  %v225 = vadd.f32 %v224, %v207
  %v226 = vrot.slane %v225, 4
  %v227 = vadd.f32 %v225, %v226
  %v228 = vrot.slane %v227, 2
  %v229 = vadd.f32 %v227, %v228
  %v230 = vrot.slane %v229, 1
  %v231 = vadd.f32 %v229, %v230
  %v232 = vadd.f32 %v210, %v231
  %233 = vst [vmem:[#allocation2] sm:$0x1] %v232
  %v234 = vld [vmem:[#allocation3] sm:$0x1]
  %v235 = vmul.f32 %v132, %v132
  %v236 = vmul.f32 %v137, %v137
  %v237 = vmul.f32 %v142, %v142
  %v238 = vmul.f32 %v147, %v147
  %v239 = vmul.f32 %v152, %v152
  %v240 = vmul.f32 %v157, %v157
  %v241 = vmul.f32 %v162, %v162
  %v242 = vmul.f32 %v167, %v167
  %v243 = vmul.f32 %v172, %v172
  %v244 = vmul.f32 %v177, %v177
  %v245 = vmul.f32 %v182, %v182
  %v246 = vmul.f32 %v187, %v187
  %v247 = vmul.f32 %v192, %v192
  %v248 = vmul.f32 %v197, %v197
  %v249 = vmul.f32 %v202, %v202
  %v250 = vmul.f32 %v207, %v207
  %v251 = vadd.f32 %v235, %v236
  %v252 = vadd.f32 %v251, %v237
  %v253 = vadd.f32 %v252, %v238
  %v254 = vadd.f32 %v253, %v239
  %v255 = vadd.f32 %v254, %v240
  %v256 = vadd.f32 %v255, %v241
  %v257 = vadd.f32 %v256, %v242
  %v258 = vadd.f32 %v257, %v243
  %v259 = vadd.f32 %v258, %v244
  %v260 = vadd.f32 %v259, %v245
  %v261 = vadd.f32 %v260, %v246
  %v262 = vadd.f32 %v261, %v247
  %v263 = vadd.f32 %v262, %v248
  %v264 = vadd.f32 %v263, %v249
  %v265 = vadd.f32 %v264, %v250
  %v266 = vrot.slane %v265, 4
  %v267 = vadd.f32 %v265, %v266
  %v268 = vrot.slane %v267, 2
  %v269 = vadd.f32 %v267, %v268
  %v270 = vrot.slane %v269, 1
  %v271 = vadd.f32 %v269, %v270
  %v272 = vadd.f32 %v234, %v271
  %273 = vst [vmem:[#allocation3] sm:$0x1] %v272
  // Predicated region
  $region26: #{convnet_forward.5} parent=0 // pred_check
    %p274 = pneg %p20
  $region27: #{convnet_forward.5} parent=0 // pred_check_branch
    %276 = sbr.rel (%p274) target = $region29
  $region28: #{convnet_forward.5} parent=0 // pred_region
    %v277 = vld [vmem:[#allocation2] sm:$0x1]
    %v278 = vmul.f32 %v277, 0.0078125
    %v279 = vld [vmem:[#allocation3] sm:$0x1]
    %v280 = vmul.f32 %v279, 0.0078125
    %v281 = vmul.f32 %v278, %v278
    %v282 = vsub.f32 %v280, %v281
    %v283 = vmax.f32 %v282, 0.0
    %v284 = vld [vmem:[%s3] sm:$0x1]
    %v285 = vadd.f32 %v283, 1e-05
    %v286 = vrsqrt.pop %v285
    %v287 = vmul.f32 %v284, %v286
    %v288 = vld [vmem:[%s4] sm:$0x1]
    %v289 = vld [vmem:[%s2] sm:$0x1]
    %v290 = vsub.f32 %v289, %v278
    %v291 = vmul.f32 %v290, %v287
    %v292 = vadd.f32 %v288, %v291
    %293 = vst [vmem:[%s5] sm:$0x1] %v287
    %294 = vst [vmem:[%s5 + $0x1] sm:$0x1] %v292
  $region29: #{convnet_forward.5} parent=0 // pred_fallthru
    _
  // Predicated region
  $region30: #{convnet_forward.5} parent=0 // pred_check
    _
  $region31: #{convnet_forward.5} parent=0 // pred_check_branch
    %296 = sbr.rel (0) target = $region33
  $region32: #{convnet_forward.5} parent=0 // pred_region
    _
  $region33: #{convnet_forward.5} parent=0 // pred_fallthru
    _
  // Predicated region
  $region34: #{convnet_forward.5} parent=0 // pred_check
    _
  $region35: #{convnet_forward.5} parent=0 // pred_check_branch
    %298 = sbr.rel (0) target = $region37
  $region36: #{convnet_forward.5} parent=0 // pred_region
    _
  $region37: #{convnet_forward.5} parent=0 // pred_fallthru
    _

// kernel: convnet_forward.8
$region0: #{convnet_forward.8}
  #allocation0 [shape = 'u32[]', space=smem, size = 0x4, offset = 0x4, fixed_abs, tag = 'smem constant byte address 0x4 - core index']
  #allocation1 [shape = 'u32[144,128]{1,0:T(1,128)}', space=vmem, size = 0x12000, scoped, tag = 'internal scratch']
  %s0 = inlined_call_operand.vmem [shape: f32[32,256], index: 0, kind: input, shape index: {}]
  %s1 = inlined_call_operand.vmem [shape: f32[256,128], index: 1, kind: input, shape index: {}]
  %s2 = inlined_call_operand.vmem [shape: f32[2,128], index: 2, kind: input, shape index: {}]
  %s3 = inlined_call_operand.vmem [shape: f32[32,128], index: 3, kind: output, shape index: {}]
  %s4 = sld [smem:[#allocation0]]
  $region22: #{convnet_forward.8} parent=0
    _
  %s6 = ssub.s32 1, %s4
  %s7 = scalar_select 0, %s6, %s4
  // Predicated region
  $region2: #{convnet_forward.8} parent=0 // pred_check
    _
  $region3: #{convnet_forward.8} parent=0 // pred_check_branch
    %9 = sbr.rel (0) target = $region5
  $region4: #{convnet_forward.8} parent=0 // pred_region
    _
  $region5: #{convnet_forward.8} parent=0 // pred_fallthru
    _
  // Predicated region
  $region6: #{convnet_forward.8} parent=0 // pred_check
    _
  $region7: #{convnet_forward.8} parent=0 // pred_check_branch
    %11 = sbr.rel (0) target = $region9
  $region8: #{convnet_forward.8} parent=0 // pred_region
    _
  $region9: #{convnet_forward.8} parent=0 // pred_fallthru
    _
  // Predicated region
  $region10: #{convnet_forward.8} parent=0 // pred_check
    _
  $region11: #{convnet_forward.8} parent=0 // pred_check_branch
    %13 = sbr.rel (0) target = $region13
  $region12: #{convnet_forward.8} parent=0 // pred_region
    _
  $region13: #{convnet_forward.8} parent=0 // pred_fallthru
    _
  %v14 = vld [vmem:[%s0] sm:$0xff]
  %v15 = vld [vmem:[%s0 + $0x8] sm:$0xff]
  %v16 = vld [vmem:[%s0 + $0x10] sm:$0xff]
  %v17 = vld [vmem:[%s0 + $0x18] sm:$0xff]
  %v18 = vld [vmem:[%s0 + $0x20] sm:$0xff]
  %v19 = vld [vmem:[%s0 + $0x28] sm:$0xff]
  %v20 = vld [vmem:[%s0 + $0x30] sm:$0xff]
  %v21 = vld [vmem:[%s0 + $0x38] sm:$0xff]
  %v22 = vld [vmem:[%s1] sm:$0xff]
  %v23 = vld [vmem:[%s1 + $0x8] sm:$0xff]
  %v24 = vld [vmem:[%s1 + $0x10] sm:$0xff]
  %v25 = vld [vmem:[%s1 + $0x18] sm:$0xff]
  %v26 = vld [vmem:[%s1 + $0x20] sm:$0xff]
  %v27 = vld [vmem:[%s1 + $0x28] sm:$0xff]
  %v28 = vld [vmem:[%s1 + $0x30] sm:$0xff]
  %v29 = vld [vmem:[%s1 + $0x38] sm:$0xff]
  %v30 = vld [vmem:[%s1 + $0x40] sm:$0xff]
  %v31 = vld [vmem:[%s1 + $0x48] sm:$0xff]
  %v32 = vld [vmem:[%s1 + $0x50] sm:$0xff]
  %v33 = vld [vmem:[%s1 + $0x58] sm:$0xff]
  %v34 = vld [vmem:[%s1 + $0x60] sm:$0xff]
  %v35 = vld [vmem:[%s1 + $0x68] sm:$0xff]
  %v36 = vld [vmem:[%s1 + $0x70] sm:$0xff]
  %v37 = vld [vmem:[%s1 + $0x78] sm:$0xff]
  %v38 = vld [vmem:[%s1 + $0x80] sm:$0xff]
  %v39 = vld [vmem:[%s1 + $0x88] sm:$0xff]
  %v40 = vld [vmem:[%s1 + $0x90] sm:$0xff]
  %v41 = vld [vmem:[%s1 + $0x98] sm:$0xff]
  %v42 = vld [vmem:[%s1 + $0xa0] sm:$0xff]
  %v43 = vld [vmem:[%s1 + $0xa8] sm:$0xff]
  %v44 = vld [vmem:[%s1 + $0xb0] sm:$0xff]
  %v45 = vld [vmem:[%s1 + $0xb8] sm:$0xff]
  %v46 = vld [vmem:[%s1 + $0xc0] sm:$0xff]
  %v47 = vld [vmem:[%s1 + $0xc8] sm:$0xff]
  %v48 = vld [vmem:[%s1 + $0xd0] sm:$0xff]
  %v49 = vld [vmem:[%s1 + $0xd8] sm:$0xff]
  %v50 = vld [vmem:[%s1 + $0xe0] sm:$0xff]
  %v51 = vld [vmem:[%s1 + $0xe8] sm:$0xff]
  %v52 = vld [vmem:[%s1 + $0xf0] sm:$0xff]
  %v53 = vld [vmem:[%s1 + $0xf8] sm:$0xff]
  %54 = vmatprep.subr.mxu0 0.0
  %55 = vmatpush1.msra.mxu0 %v22
  %56 = vmatprep.subr.mxu0 0.0
  %57 = vmatpush1.msra.mxu0 %v23
  %58 = vmatprep.subr.mxu0 0.0
  %59 = vmatpush1.msra.mxu0 %v24
  %60 = vmatprep.subr.mxu0 0.0
  %61 = vmatpush1.msra.mxu0 %v25
  %62 = vmatprep.subr.mxu0 0.0
  %63 = vmatpush1.msra.mxu0 %v26
  %64 = vmatprep.subr.mxu0 0.0
  %65 = vmatpush1.msra.mxu0 %v27
  %66 = vmatprep.subr.mxu0 0.0
  %67 = vmatpush1.msra.mxu0 %v28
  %68 = vmatprep.subr.mxu0 0.0
  %69 = vmatpush1.msra.mxu0 %v29
  %70 = vmatprep.subr.mxu0 0.0
  %71 = vmatpush1.msra.mxu0 %v30
  %72 = vmatprep.subr.mxu0 0.0
  %73 = vmatpush1.msra.mxu0 %v31
  %74 = vmatprep.subr.mxu0 0.0
  %75 = vmatpush1.msra.mxu0 %v32
  %76 = vmatprep.subr.mxu0 0.0
  %77 = vmatpush1.msra.mxu0 %v33
  %78 = vmatprep.subr.mxu0 0.0
  %79 = vmatpush1.msra.mxu0 %v34
  %80 = vmatprep.subr.mxu0 0.0
  %81 = vmatpush1.msra.mxu0 %v35
  %82 = vmatprep.subr.mxu0 0.0
  %83 = vmatpush1.msra.mxu0 %v36
  %84 = vmatprep.subr.mxu0 0.0
  %85 = vmatpush1.msra.mxu0 %v37
  %86 = vmatprep.subr.mxu0 0.0
  %87 = vmatpush1.msra.mxu0 %v38
  %88 = vmatprep.subr.mxu0 0.0
  %89 = vmatpush1.msra.mxu0 %v39
  %90 = vmatprep.subr.mxu0 0.0
  %91 = vmatpush1.msra.mxu0 %v40
  %92 = vmatprep.subr.mxu0 0.0
  %93 = vmatpush1.msra.mxu0 %v41
  %94 = vmatprep.subr.mxu0 0.0
  %95 = vmatpush1.msra.mxu0 %v42
  %96 = vmatprep.subr.mxu0 0.0
  %97 = vmatpush1.msra.mxu0 %v43
  %98 = vmatprep.subr.mxu0 0.0
  %99 = vmatpush1.msra.mxu0 %v44
  %100 = vmatprep.subr.mxu0 0.0
  %101 = vmatpush1.msra.mxu0 %v45
  %102 = vmatprep.subr.mxu0 0.0
  %103 = vmatpush1.msra.mxu0 %v46
  %104 = vmatprep.subr.mxu0 0.0
  %105 = vmatpush1.msra.mxu0 %v47
  %106 = vmatprep.subr.mxu0 0.0
  %107 = vmatpush1.msra.mxu0 %v48
  %108 = vmatprep.subr.mxu0 0.0
  %109 = vmatpush1.msra.mxu0 %v49
  %110 = vmatprep.subr.mxu0 0.0
  %111 = vmatpush1.msra.mxu0 %v50
  %112 = vmatprep.subr.mxu0 0.0
  %113 = vmatpush1.msra.mxu0 %v51
  %114 = vmatprep.subr.mxu0 0.0
  %115 = vmatpush1.msra.mxu0 %v52
  %116 = vmatprep.subr.mxu0 0.0
  %117 = vmatpush1.msra.mxu0 %v53
  %118 = vmatprep.mubr.f32.mxu0 %v15
  %119 = vmatmul.mubr.f32.gmra.mrb[0].mxu0 %v14
  %v120 = vpop.f32.mrb[0].mxu0
  %v121 = vadd.f32 0.0, %v120
  %v122 = vpop.f32.mrb[0].mxu0
  %123 = vmatprep.mubr.f32.mxu0 %v17
  %124 = vmatmul.mubr.f32.gmra.mrb[0].mxu0 %v16
  %v125 = vpop.f32.mrb[0].mxu0
  %v126 = vadd.f32 0.0, %v125
  %v127 = vpop.f32.mrb[0].mxu0
  %128 = vmatprep.mubr.f32.mxu0 %v19
  %129 = vmatmul.mubr.f32.gmra.mrb[0].mxu0 %v18
  %v130 = vpop.f32.mrb[0].mxu0
  %v131 = vadd.f32 0.0, %v130
  %v132 = vpop.f32.mrb[0].mxu0
  %133 = vmatprep.mubr.f32.mxu0 %v21
  %134 = vmatmul.mubr.f32.gmra.mrb[0].mxu0 %v20
  %v135 = vpop.f32.mrb[0].mxu0
  %v136 = vadd.f32 0.0, %v135
  %v137 = vpop.f32.mrb[0].mxu0
  %138 = vdwg.mxu0
  %v139 = vld [vmem:[%s2] sm:$0x1]
  %v140 = vlaneseq
  %v141 = vshrl.u32 %v140, 7
  %v142 = vsub.s32 0, %v141
  %v143 = vrot.slane %v139, %v142
  %v144 = vmul.f32 %v121, %v143
  %v145 = vmul.f32 %v126, %v143
  %v146 = vmul.f32 %v131, %v143
  %v147 = vmul.f32 %v136, %v143
  %v148 = vld [vmem:[%s2 + $0x1] sm:$0x1]
  %v149 = vlaneseq
  %v150 = vshrl.u32 %v149, 7
  %v151 = vsub.s32 0, %v150
  %v152 = vrot.slane %v148, %v151
  %v153 = vadd.f32 %v144, %v152
  %v154 = vadd.f32 %v145, %v152
  %v155 = vadd.f32 %v146, %v152
  %v156 = vadd.f32 %v147, %v152
  %v157 = vmax.f32 %v153, 0.0
  %v158 = vmax.f32 %v154, 0.0
  %v159 = vmax.f32 %v155, 0.0
  %v160 = vmax.f32 %v156, 0.0
  %161 = vst [vmem:[%s3] sm:$0xff] %v157
  %162 = vst [vmem:[%s3 + $0x8] sm:$0xff] %v158
  %163 = vst [vmem:[%s3 + $0x10] sm:$0xff] %v159
  %164 = vst [vmem:[%s3 + $0x18] sm:$0xff] %v160
  // Predicated region
  $region14: #{convnet_forward.8} parent=0 // pred_check
    _
  $region15: #{convnet_forward.8} parent=0 // pred_check_branch
    %166 = sbr.rel (0) target = $region17
  $region16: #{convnet_forward.8} parent=0 // pred_region
    _
  $region17: #{convnet_forward.8} parent=0 // pred_fallthru
    _
  // Predicated region
  $region18: #{convnet_forward.8} parent=0 // pred_check
    _
  $region19: #{convnet_forward.8} parent=0 // pred_check_branch
    %168 = sbr.rel (0) target = $region21
  $region20: #{convnet_forward.8} parent=0 // pred_region
    _
  $region21: #{convnet_forward.8} parent=0 // pred_fallthru
    _

// kernel: convnet_forward.7
$region0: #{convnet_forward.7}
  #allocation0 [shape = 'u32[]', space=smem, size = 0x4, offset = 0x4, fixed_abs, tag = 'smem constant byte address 0x4 - core index']
  #allocation1 [shape = 'u32[144,128]{1,0:T(1,128)}', space=vmem, size = 0x12000, scoped, tag = 'internal scratch']
  #allocation2 [shape = 'f32[1,128]{1,0:T(1,128)}', space=vmem, size = 0x200, scoped, tag = 'scratch operand']
  #allocation3 [shape = 'f32[1,128]{1,0:T(1,128)}', space=vmem, size = 0x200, scoped, tag = 'scratch operand']
  %s0 = inlined_call_operand.vmem [shape: f32[32,256], index: 0, kind: input, shape index: {}]
  %s1 = inlined_call_operand.vmem [shape: f32[256,128], index: 1, kind: input, shape index: {}]
  %s2 = inlined_call_operand.vmem [shape: f32[1,128], index: 2, kind: input, shape index: {}]
  %s3 = inlined_call_operand.vmem [shape: f32[1,128], index: 3, kind: input, shape index: {}]
  %s4 = inlined_call_operand.vmem [shape: f32[1,128], index: 4, kind: input, shape index: {}]
  %s5 = inlined_call_operand.vmem [shape: f32[2,128], index: 5, kind: output, shape index: {}]
  %s6 = sld [smem:[#allocation0]]
  $region38: #{convnet_forward.7} parent=0
    _
  %s8 = ssub.s32 1, %s6
  %s9 = scalar_select 0, %s8, %s6
  // Predicated region
  $region2: #{convnet_forward.7} parent=0 // pred_check
    _
  $region3: #{convnet_forward.7} parent=0 // pred_check_branch
    %11 = sbr.rel (0) target = $region5
  $region4: #{convnet_forward.7} parent=0 // pred_region
    _
  $region5: #{convnet_forward.7} parent=0 // pred_fallthru
    _
  // Predicated region
  $region6: #{convnet_forward.7} parent=0 // pred_check
    _
  $region7: #{convnet_forward.7} parent=0 // pred_check_branch
    %13 = sbr.rel (0) target = $region9
  $region8: #{convnet_forward.7} parent=0 // pred_region
    _
  $region9: #{convnet_forward.7} parent=0 // pred_fallthru
    _
  // Predicated region
  $region10: #{convnet_forward.7} parent=0 // pred_check
    _
  $region11: #{convnet_forward.7} parent=0 // pred_check_branch
    %15 = sbr.rel (0) target = $region13
  $region12: #{convnet_forward.7} parent=0 // pred_region
    _
  $region13: #{convnet_forward.7} parent=0 // pred_fallthru
    _
  // Predicated region
  $region14: #{convnet_forward.7} parent=0 // pred_check
    _
  $region15: #{convnet_forward.7} parent=0 // pred_check_branch
    %17 = sbr.rel (0) target = $region17
  $region16: #{convnet_forward.7} parent=0 // pred_region
    _
  $region17: #{convnet_forward.7} parent=0 // pred_fallthru
    _
  // Predicated region
  $region18: #{convnet_forward.7} parent=0 // pred_check
    _
  $region19: #{convnet_forward.7} parent=0 // pred_check_branch
    %19 = sbr.rel (0) target = $region21
  $region20: #{convnet_forward.7} parent=0 // pred_region
    _
  $region21: #{convnet_forward.7} parent=0 // pred_fallthru
    _
  %p20 = scmp.eq.s32.totalorder 0, 0
  // Predicated region
  $region22: #{convnet_forward.7} parent=0 // pred_check
    %p21 = pneg %p20
  $region23: #{convnet_forward.7} parent=0 // pred_check_branch
    %23 = sbr.rel (%p21) target = $region25
  $region24: #{convnet_forward.7} parent=0 // pred_region
    %24 = vst [vmem:[#allocation2] sm:$0x1] 0.0
    %25 = vst [vmem:[#allocation3] sm:$0x1] 0.0
  $region25: #{convnet_forward.7} parent=0 // pred_fallthru
    _
  %v26 = vld [vmem:[%s0] sm:$0xff]
  %v27 = vld [vmem:[%s0 + $0x8] sm:$0xff]
  %v28 = vld [vmem:[%s0 + $0x10] sm:$0xff]
  %v29 = vld [vmem:[%s0 + $0x18] sm:$0xff]
  %v30 = vld [vmem:[%s0 + $0x20] sm:$0xff]
  %v31 = vld [vmem:[%s0 + $0x28] sm:$0xff]
  %v32 = vld [vmem:[%s0 + $0x30] sm:$0xff]
  %v33 = vld [vmem:[%s0 + $0x38] sm:$0xff]
  %v34 = vld [vmem:[%s1] sm:$0xff]
  %v35 = vld [vmem:[%s1 + $0x8] sm:$0xff]
  %v36 = vld [vmem:[%s1 + $0x10] sm:$0xff]
  %v37 = vld [vmem:[%s1 + $0x18] sm:$0xff]
  %v38 = vld [vmem:[%s1 + $0x20] sm:$0xff]
  %v39 = vld [vmem:[%s1 + $0x28] sm:$0xff]
  %v40 = vld [vmem:[%s1 + $0x30] sm:$0xff]
  %v41 = vld [vmem:[%s1 + $0x38] sm:$0xff]
  %v42 = vld [vmem:[%s1 + $0x40] sm:$0xff]
  %v43 = vld [vmem:[%s1 + $0x48] sm:$0xff]
  %v44 = vld [vmem:[%s1 + $0x50] sm:$0xff]
  %v45 = vld [vmem:[%s1 + $0x58] sm:$0xff]
  %v46 = vld [vmem:[%s1 + $0x60] sm:$0xff]
  %v47 = vld [vmem:[%s1 + $0x68] sm:$0xff]
  %v48 = vld [vmem:[%s1 + $0x70] sm:$0xff]
  %v49 = vld [vmem:[%s1 + $0x78] sm:$0xff]
  %v50 = vld [vmem:[%s1 + $0x80] sm:$0xff]
  %v51 = vld [vmem:[%s1 + $0x88] sm:$0xff]
  %v52 = vld [vmem:[%s1 + $0x90] sm:$0xff]
  %v53 = vld [vmem:[%s1 + $0x98] sm:$0xff]
  %v54 = vld [vmem:[%s1 + $0xa0] sm:$0xff]
  %v55 = vld [vmem:[%s1 + $0xa8] sm:$0xff]
  %v56 = vld [vmem:[%s1 + $0xb0] sm:$0xff]
  %v57 = vld [vmem:[%s1 + $0xb8] sm:$0xff]
  %v58 = vld [vmem:[%s1 + $0xc0] sm:$0xff]
  %v59 = vld [vmem:[%s1 + $0xc8] sm:$0xff]
  %v60 = vld [vmem:[%s1 + $0xd0] sm:$0xff]
  %v61 = vld [vmem:[%s1 + $0xd8] sm:$0xff]
  %v62 = vld [vmem:[%s1 + $0xe0] sm:$0xff]
  %v63 = vld [vmem:[%s1 + $0xe8] sm:$0xff]
  %v64 = vld [vmem:[%s1 + $0xf0] sm:$0xff]
  %v65 = vld [vmem:[%s1 + $0xf8] sm:$0xff]
  %v66 = vld [vmem:[%s2] sm:$0x1]
  %v68 = vlaneseq
  %v69 = vshrl.u32 %v68, 7
  %v70 = vsub.s32 0, %v69
  %v71 = vrot.slane %v66, %v70
  %73 = vmatprep.subr.mxu0 0.0
  %74 = vmatpush1.msra.mxu0 %v34
  %75 = vmatprep.subr.mxu0 0.0
  %76 = vmatpush1.msra.mxu0 %v35
  %77 = vmatprep.subr.mxu0 0.0
  %78 = vmatpush1.msra.mxu0 %v36
  %79 = vmatprep.subr.mxu0 0.0
  %80 = vmatpush1.msra.mxu0 %v37
  %81 = vmatprep.subr.mxu0 0.0
  %82 = vmatpush1.msra.mxu0 %v38
  %83 = vmatprep.subr.mxu0 0.0
  %84 = vmatpush1.msra.mxu0 %v39
  %85 = vmatprep.subr.mxu0 0.0
  %86 = vmatpush1.msra.mxu0 %v40
  %87 = vmatprep.subr.mxu0 0.0
  %88 = vmatpush1.msra.mxu0 %v41
  %89 = vmatprep.subr.mxu0 0.0
  %90 = vmatpush1.msra.mxu0 %v42
  %91 = vmatprep.subr.mxu0 0.0
  %92 = vmatpush1.msra.mxu0 %v43
  %93 = vmatprep.subr.mxu0 0.0
  %94 = vmatpush1.msra.mxu0 %v44
  %95 = vmatprep.subr.mxu0 0.0
  %96 = vmatpush1.msra.mxu0 %v45
  %97 = vmatprep.subr.mxu0 0.0
  %98 = vmatpush1.msra.mxu0 %v46
  %99 = vmatprep.subr.mxu0 0.0
  %100 = vmatpush1.msra.mxu0 %v47
  %101 = vmatprep.subr.mxu0 0.0
  %102 = vmatpush1.msra.mxu0 %v48
  %103 = vmatprep.subr.mxu0 0.0
  %104 = vmatpush1.msra.mxu0 %v49
  %105 = vmatprep.subr.mxu0 0.0
  %106 = vmatpush1.msra.mxu0 %v50
  %107 = vmatprep.subr.mxu0 0.0
  %108 = vmatpush1.msra.mxu0 %v51
  %109 = vmatprep.subr.mxu0 0.0
  %110 = vmatpush1.msra.mxu0 %v52
  %111 = vmatprep.subr.mxu0 0.0
  %112 = vmatpush1.msra.mxu0 %v53
  %113 = vmatprep.subr.mxu0 0.0
  %114 = vmatpush1.msra.mxu0 %v54
  %115 = vmatprep.subr.mxu0 0.0
  %116 = vmatpush1.msra.mxu0 %v55
  %117 = vmatprep.subr.mxu0 0.0
  %118 = vmatpush1.msra.mxu0 %v56
  %119 = vmatprep.subr.mxu0 0.0
  %120 = vmatpush1.msra.mxu0 %v57
  %121 = vmatprep.subr.mxu0 0.0
  %122 = vmatpush1.msra.mxu0 %v58
  %123 = vmatprep.subr.mxu0 0.0
  %124 = vmatpush1.msra.mxu0 %v59
  %125 = vmatprep.subr.mxu0 0.0
  %126 = vmatpush1.msra.mxu0 %v60
  %127 = vmatprep.subr.mxu0 0.0
  %128 = vmatpush1.msra.mxu0 %v61
  %129 = vmatprep.subr.mxu0 0.0
  %130 = vmatpush1.msra.mxu0 %v62
  %131 = vmatprep.subr.mxu0 0.0
  %132 = vmatpush1.msra.mxu0 %v63
  %133 = vmatprep.subr.mxu0 0.0
  %134 = vmatpush1.msra.mxu0 %v64
  %135 = vmatprep.subr.mxu0 0.0
  %136 = vmatpush1.msra.mxu0 %v65
  %137 = vmatprep.mubr.f32.mxu0 %v27
  %138 = vmatmul.mubr.f32.gmra.mrb[0].mxu0 %v26
  %v139 = vpop.f32.mrb[0].mxu0
  %v140 = vadd.f32 %v71, %v139
  %v141 = vpop.f32.mrb[0].mxu0
  %142 = vmatprep.mubr.f32.mxu0 %v29
  %143 = vmatmul.mubr.f32.gmra.mrb[0].mxu0 %v28
  %v144 = vpop.f32.mrb[0].mxu0
  %v145 = vadd.f32 %v71, %v144
  %v146 = vpop.f32.mrb[0].mxu0
  %147 = vmatprep.mubr.f32.mxu0 %v31
  %148 = vmatmul.mubr.f32.gmra.mrb[0].mxu0 %v30
  %v149 = vpop.f32.mrb[0].mxu0
  %v150 = vadd.f32 %v71, %v149
  %v151 = vpop.f32.mrb[0].mxu0
  %152 = vmatprep.mubr.f32.mxu0 %v33
  %153 = vmatmul.mubr.f32.gmra.mrb[0].mxu0 %v32
  %v154 = vpop.f32.mrb[0].mxu0
  %v155 = vadd.f32 %v71, %v154
  %v156 = vpop.f32.mrb[0].mxu0
  %157 = vdwg.mxu0
  %v158 = vld [vmem:[#allocation2] sm:$0x1]
  %v159 = vadd.f32 %v140, %v145
  %v160 = vadd.f32 %v159, %v150
  %v161 = vadd.f32 %v160, %v155
  %v162 = vrot.slane %v161, 4
  %v163 = vadd.f32 %v161, %v162
  %v164 = vrot.slane %v163, 2
  %v165 = vadd.f32 %v163, %v164
  %v166 = vrot.slane %v165, 1
  %v167 = vadd.f32 %v165, %v166
  %v168 = vadd.f32 %v158, %v167
  %169 = vst [vmem:[#allocation2] sm:$0x1] %v168
  %v170 = vld [vmem:[#allocation3] sm:$0x1]
  %v171 = vmul.f32 %v140, %v140
  %v172 = vmul.f32 %v145, %v145
  %v173 = vmul.f32 %v150, %v150
  %v174 = vmul.f32 %v155, %v155
  %v175 = vadd.f32 %v171, %v172
  %v176 = vadd.f32 %v175, %v173
  %v177 = vadd.f32 %v176, %v174
  %v178 = vrot.slane %v177, 4
  %v179 = vadd.f32 %v177, %v178
  %v180 = vrot.slane %v179, 2
  %v181 = vadd.f32 %v179, %v180
  %v182 = vrot.slane %v181, 1
  %v183 = vadd.f32 %v181, %v182
  %v184 = vadd.f32 %v170, %v183
  %185 = vst [vmem:[#allocation3] sm:$0x1] %v184
  // Predicated region
  $region26: #{convnet_forward.7} parent=0 // pred_check
    %p186 = pneg %p20
  $region27: #{convnet_forward.7} parent=0 // pred_check_branch
    %188 = sbr.rel (%p186) target = $region29
  $region28: #{convnet_forward.7} parent=0 // pred_region
    %v189 = vld [vmem:[#allocation2] sm:$0x1]
    %v190 = vmul.f32 %v189, 0.03125
    %v191 = vld [vmem:[#allocation3] sm:$0x1]
    %v192 = vmul.f32 %v191, 0.03125
    %v193 = vmul.f32 %v190, %v190
    %v194 = vsub.f32 %v192, %v193
    %v195 = vmax.f32 %v194, 0.0
    %v196 = vld [vmem:[%s3] sm:$0x1]
    %v197 = vadd.f32 %v195, 1e-05
    %v198 = vrsqrt.pop %v197
    %v199 = vmul.f32 %v196, %v198
    %v200 = vld [vmem:[%s4] sm:$0x1]
    %v201 = vld [vmem:[%s2] sm:$0x1]
    %v202 = vsub.f32 %v201, %v190
    %v203 = vmul.f32 %v202, %v199
    %v204 = vadd.f32 %v200, %v203
    %205 = vst [vmem:[%s5] sm:$0x1] %v199
    %206 = vst [vmem:[%s5 + $0x1] sm:$0x1] %v204
  $region29: #{convnet_forward.7} parent=0 // pred_fallthru
    _
  // Predicated region
  $region30: #{convnet_forward.7} parent=0 // pred_check
    _
  $region31: #{convnet_forward.7} parent=0 // pred_check_branch
    %208 = sbr.rel (0) target = $region33
  $region32: #{convnet_forward.7} parent=0 // pred_region
    _
  $region33: #{convnet_forward.7} parent=0 // pred_fallthru
    _
  // Predicated region
  $region34: #{convnet_forward.7} parent=0 // pred_check
    _
  $region35: #{convnet_forward.7} parent=0 // pred_check_branch
    %210 = sbr.rel (0) target = $region37
  $region36: #{convnet_forward.7} parent=0 // pred_region
    _
  $region37: #{convnet_forward.7} parent=0 // pred_fallthru
    _

// kernel: convnet_forward.9
$region0: #{convnet_forward.9}
  #allocation0 [shape = 'u32[]', space=smem, size = 0x4, offset = 0x4, fixed_abs, tag = 'smem constant byte address 0x4 - core index']
  #allocation1 [shape = 'u32[144,128]{1,0:T(1,128)}', space=vmem, size = 0x12000, scoped, tag = 'internal scratch']
  %s0 = inlined_call_operand.vmem [shape: f32[8,512], index: 0, kind: input, shape index: {}]
  %s1 = inlined_call_operand.vmem [shape: f32[512,128], index: 1, kind: input, shape index: {}]
  %s2 = inlined_call_operand.vmem [shape: f32[1,128], index: 2, kind: input, shape index: {}]
  %s3 = inlined_call_operand.vmem [shape: f32[8,128], index: 3, kind: output, shape index: {}]
  %s4 = sld [smem:[#allocation0]]
  $region22: #{convnet_forward.9} parent=0
    _
  %s6 = ssub.s32 1, %s4
  %s7 = scalar_select 0, %s6, %s4
  // Predicated region
  $region2: #{convnet_forward.9} parent=0 // pred_check
    _
  $region3: #{convnet_forward.9} parent=0 // pred_check_branch
    %9 = sbr.rel (0) target = $region5
  $region4: #{convnet_forward.9} parent=0 // pred_region
    _
  $region5: #{convnet_forward.9} parent=0 // pred_fallthru
    _
  // Predicated region
  $region6: #{convnet_forward.9} parent=0 // pred_check
    _
  $region7: #{convnet_forward.9} parent=0 // pred_check_branch
    %11 = sbr.rel (0) target = $region9
  $region8: #{convnet_forward.9} parent=0 // pred_region
    _
  $region9: #{convnet_forward.9} parent=0 // pred_fallthru
    _
  // Predicated region
  $region10: #{convnet_forward.9} parent=0 // pred_check
    _
  $region11: #{convnet_forward.9} parent=0 // pred_check_branch
    %13 = sbr.rel (0) target = $region13
  $region12: #{convnet_forward.9} parent=0 // pred_region
    _
  $region13: #{convnet_forward.9} parent=0 // pred_fallthru
    _
  %v14 = vld [vmem:[%s0] sm:$0xff]
  %v15 = vld [vmem:[%s0 + $0x8] sm:$0xff]
  %v16 = vld [vmem:[%s0 + $0x10] sm:$0xff]
  %v17 = vld [vmem:[%s0 + $0x18] sm:$0xff]
  %v18 = vld [vmem:[%s1] sm:$0xff]
  %v19 = vld [vmem:[%s1 + $0x8] sm:$0xff]
  %v20 = vld [vmem:[%s1 + $0x10] sm:$0xff]
  %v21 = vld [vmem:[%s1 + $0x18] sm:$0xff]
  %v22 = vld [vmem:[%s1 + $0x20] sm:$0xff]
  %v23 = vld [vmem:[%s1 + $0x28] sm:$0xff]
  %v24 = vld [vmem:[%s1 + $0x30] sm:$0xff]
  %v25 = vld [vmem:[%s1 + $0x38] sm:$0xff]
  %v26 = vld [vmem:[%s1 + $0x40] sm:$0xff]
  %v27 = vld [vmem:[%s1 + $0x48] sm:$0xff]
  %v28 = vld [vmem:[%s1 + $0x50] sm:$0xff]
  %v29 = vld [vmem:[%s1 + $0x58] sm:$0xff]
  %v30 = vld [vmem:[%s1 + $0x60] sm:$0xff]
  %v31 = vld [vmem:[%s1 + $0x68] sm:$0xff]
  %v32 = vld [vmem:[%s1 + $0x70] sm:$0xff]
  %v33 = vld [vmem:[%s1 + $0x78] sm:$0xff]
  %v34 = vld [vmem:[%s1 + $0x80] sm:$0xff]
  %v35 = vld [vmem:[%s1 + $0x88] sm:$0xff]
  %v36 = vld [vmem:[%s1 + $0x90] sm:$0xff]
  %v37 = vld [vmem:[%s1 + $0x98] sm:$0xff]
  %v38 = vld [vmem:[%s1 + $0xa0] sm:$0xff]
  %v39 = vld [vmem:[%s1 + $0xa8] sm:$0xff]
  %v40 = vld [vmem:[%s1 + $0xb0] sm:$0xff]
  %v41 = vld [vmem:[%s1 + $0xb8] sm:$0xff]
  %v42 = vld [vmem:[%s1 + $0xc0] sm:$0xff]
  %v43 = vld [vmem:[%s1 + $0xc8] sm:$0xff]
  %v44 = vld [vmem:[%s1 + $0xd0] sm:$0xff]
  %v45 = vld [vmem:[%s1 + $0xd8] sm:$0xff]
  %v46 = vld [vmem:[%s1 + $0xe0] sm:$0xff]
  %v47 = vld [vmem:[%s1 + $0xe8] sm:$0xff]
  %v48 = vld [vmem:[%s1 + $0xf0] sm:$0xff]
  %v49 = vld [vmem:[%s1 + $0xf8] sm:$0xff]
  %v50 = vld [vmem:[%s1 + $0x100] sm:$0xff]
  %v51 = vld [vmem:[%s1 + $0x108] sm:$0xff]
  %v52 = vld [vmem:[%s1 + $0x110] sm:$0xff]
  %v53 = vld [vmem:[%s1 + $0x118] sm:$0xff]
  %v54 = vld [vmem:[%s1 + $0x120] sm:$0xff]
  %v55 = vld [vmem:[%s1 + $0x128] sm:$0xff]
  %v56 = vld [vmem:[%s1 + $0x130] sm:$0xff]
  %v57 = vld [vmem:[%s1 + $0x138] sm:$0xff]
  %v58 = vld [vmem:[%s1 + $0x140] sm:$0xff]
  %v59 = vld [vmem:[%s1 + $0x148] sm:$0xff]
  %v60 = vld [vmem:[%s1 + $0x150] sm:$0xff]
  %v61 = vld [vmem:[%s1 + $0x158] sm:$0xff]
  %v62 = vld [vmem:[%s1 + $0x160] sm:$0xff]
  %v63 = vld [vmem:[%s1 + $0x168] sm:$0xff]
  %v64 = vld [vmem:[%s1 + $0x170] sm:$0xff]
  %v65 = vld [vmem:[%s1 + $0x178] sm:$0xff]
  %v66 = vld [vmem:[%s1 + $0x180] sm:$0xff]
  %v67 = vld [vmem:[%s1 + $0x188] sm:$0xff]
  %v68 = vld [vmem:[%s1 + $0x190] sm:$0xff]
  %v69 = vld [vmem:[%s1 + $0x198] sm:$0xff]
  %v70 = vld [vmem:[%s1 + $0x1a0] sm:$0xff]
  %v71 = vld [vmem:[%s1 + $0x1a8] sm:$0xff]
  %v72 = vld [vmem:[%s1 + $0x1b0] sm:$0xff]
  %v73 = vld [vmem:[%s1 + $0x1b8] sm:$0xff]
  %v74 = vld [vmem:[%s1 + $0x1c0] sm:$0xff]
  %v75 = vld [vmem:[%s1 + $0x1c8] sm:$0xff]
  %v76 = vld [vmem:[%s1 + $0x1d0] sm:$0xff]
  %v77 = vld [vmem:[%s1 + $0x1d8] sm:$0xff]
  %v78 = vld [vmem:[%s1 + $0x1e0] sm:$0xff]
  %v79 = vld [vmem:[%s1 + $0x1e8] sm:$0xff]
  %v80 = vld [vmem:[%s1 + $0x1f0] sm:$0xff]
  %v81 = vld [vmem:[%s1 + $0x1f8] sm:$0xff]
  %v82 = vld [vmem:[%s2] sm:$0x1]
  %v84 = vlaneseq
  %v85 = vshrl.u32 %v84, 7
  %v86 = vsub.s32 0, %v85
  %v87 = vrot.slane %v82, %v86
  %89 = vmatprep.subr.mxu0 0.0
  %90 = vmatpush1.msra.mxu0 %v18
  %91 = vmatprep.subr.mxu0 0.0
  %92 = vmatpush1.msra.mxu0 %v19
  %93 = vmatprep.subr.mxu0 0.0
  %94 = vmatpush1.msra.mxu0 %v20
  %95 = vmatprep.subr.mxu0 0.0
  %96 = vmatpush1.msra.mxu0 %v21
  %97 = vmatprep.subr.mxu0 0.0
  %98 = vmatpush1.msra.mxu0 %v22
  %99 = vmatprep.subr.mxu0 0.0
  %100 = vmatpush1.msra.mxu0 %v23
  %101 = vmatprep.subr.mxu0 0.0
  %102 = vmatpush1.msra.mxu0 %v24
  %103 = vmatprep.subr.mxu0 0.0
  %104 = vmatpush1.msra.mxu0 %v25
  %105 = vmatprep.subr.mxu0 0.0
  %106 = vmatpush1.msra.mxu0 %v26
  %107 = vmatprep.subr.mxu0 0.0
  %108 = vmatpush1.msra.mxu0 %v27
  %109 = vmatprep.subr.mxu0 0.0
  %110 = vmatpush1.msra.mxu0 %v28
  %111 = vmatprep.subr.mxu0 0.0
  %112 = vmatpush1.msra.mxu0 %v29
  %113 = vmatprep.subr.mxu0 0.0
  %114 = vmatpush1.msra.mxu0 %v30
  %115 = vmatprep.subr.mxu0 0.0
  %116 = vmatpush1.msra.mxu0 %v31
  %117 = vmatprep.subr.mxu0 0.0
  %118 = vmatpush1.msra.mxu0 %v32
  %119 = vmatprep.subr.mxu0 0.0
  %120 = vmatpush1.msra.mxu0 %v33
  %121 = vmatprep.subr.mxu0 0.0
  %122 = vmatpush1.msra.mxu0 %v34
  %123 = vmatprep.subr.mxu0 0.0
  %124 = vmatpush1.msra.mxu0 %v35
  %125 = vmatprep.subr.mxu0 0.0
  %126 = vmatpush1.msra.mxu0 %v36
  %127 = vmatprep.subr.mxu0 0.0
  %128 = vmatpush1.msra.mxu0 %v37
  %129 = vmatprep.subr.mxu0 0.0
  %130 = vmatpush1.msra.mxu0 %v38
  %131 = vmatprep.subr.mxu0 0.0
  %132 = vmatpush1.msra.mxu0 %v39
  %133 = vmatprep.subr.mxu0 0.0
  %134 = vmatpush1.msra.mxu0 %v40
  %135 = vmatprep.subr.mxu0 0.0
  %136 = vmatpush1.msra.mxu0 %v41
  %137 = vmatprep.subr.mxu0 0.0
  %138 = vmatpush1.msra.mxu0 %v42
  %139 = vmatprep.subr.mxu0 0.0
  %140 = vmatpush1.msra.mxu0 %v43
  %141 = vmatprep.subr.mxu0 0.0
  %142 = vmatpush1.msra.mxu0 %v44
  %143 = vmatprep.subr.mxu0 0.0
  %144 = vmatpush1.msra.mxu0 %v45
  %145 = vmatprep.subr.mxu0 0.0
  %146 = vmatpush1.msra.mxu0 %v46
  %147 = vmatprep.subr.mxu0 0.0
  %148 = vmatpush1.msra.mxu0 %v47
  %149 = vmatprep.subr.mxu0 0.0
  %150 = vmatpush1.msra.mxu0 %v48
  %151 = vmatprep.subr.mxu0 0.0
  %152 = vmatpush1.msra.mxu0 %v49
  %153 = vmatprep.mubr.f32.mxu0 %v15
  %154 = vmatmul.mubr.f32.gmra.mrb[0].mxu0 %v14
  %v155 = vpop.f32.mrb[0].mxu0
  %v156 = vadd.f32 %v87, %v155
  %v157 = vpop.f32.mrb[0].mxu0
  %158 = vdwg.mxu0
  %159 = vmatprep.subr.mxu0 0.0
  %160 = vmatpush1.msra.mxu0 %v50
  %161 = vmatprep.subr.mxu0 0.0
  %162 = vmatpush1.msra.mxu0 %v51
  %163 = vmatprep.subr.mxu0 0.0
  %164 = vmatpush1.msra.mxu0 %v52
  %165 = vmatprep.subr.mxu0 0.0
  %166 = vmatpush1.msra.mxu0 %v53
  %167 = vmatprep.subr.mxu0 0.0
  %168 = vmatpush1.msra.mxu0 %v54
  %169 = vmatprep.subr.mxu0 0.0
  %170 = vmatpush1.msra.mxu0 %v55
  %171 = vmatprep.subr.mxu0 0.0
  %172 = vmatpush1.msra.mxu0 %v56
  %173 = vmatprep.subr.mxu0 0.0
  %174 = vmatpush1.msra.mxu0 %v57
  %175 = vmatprep.subr.mxu0 0.0
  %176 = vmatpush1.msra.mxu0 %v58
  %177 = vmatprep.subr.mxu0 0.0
  %178 = vmatpush1.msra.mxu0 %v59
  %179 = vmatprep.subr.mxu0 0.0
  %180 = vmatpush1.msra.mxu0 %v60
  %181 = vmatprep.subr.mxu0 0.0
  %182 = vmatpush1.msra.mxu0 %v61
  %183 = vmatprep.subr.mxu0 0.0
  %184 = vmatpush1.msra.mxu0 %v62
  %185 = vmatprep.subr.mxu0 0.0
  %186 = vmatpush1.msra.mxu0 %v63
  %187 = vmatprep.subr.mxu0 0.0
  %188 = vmatpush1.msra.mxu0 %v64
  %189 = vmatprep.subr.mxu0 0.0
  %190 = vmatpush1.msra.mxu0 %v65
  %191 = vmatprep.subr.mxu0 0.0
  %192 = vmatpush1.msra.mxu0 %v66
  %193 = vmatprep.subr.mxu0 0.0
  %194 = vmatpush1.msra.mxu0 %v67
  %195 = vmatprep.subr.mxu0 0.0
  %196 = vmatpush1.msra.mxu0 %v68
  %197 = vmatprep.subr.mxu0 0.0
  %198 = vmatpush1.msra.mxu0 %v69
  %199 = vmatprep.subr.mxu0 0.0
  %200 = vmatpush1.msra.mxu0 %v70
  %201 = vmatprep.subr.mxu0 0.0
  %202 = vmatpush1.msra.mxu0 %v71
  %203 = vmatprep.subr.mxu0 0.0
  %204 = vmatpush1.msra.mxu0 %v72
  %205 = vmatprep.subr.mxu0 0.0
  %206 = vmatpush1.msra.mxu0 %v73
  %207 = vmatprep.subr.mxu0 0.0
  %208 = vmatpush1.msra.mxu0 %v74
  %209 = vmatprep.subr.mxu0 0.0
  %210 = vmatpush1.msra.mxu0 %v75
  %211 = vmatprep.subr.mxu0 0.0
  %212 = vmatpush1.msra.mxu0 %v76
  %213 = vmatprep.subr.mxu0 0.0
  %214 = vmatpush1.msra.mxu0 %v77
  %215 = vmatprep.subr.mxu0 0.0
  %216 = vmatpush1.msra.mxu0 %v78
  %217 = vmatprep.subr.mxu0 0.0
  %218 = vmatpush1.msra.mxu0 %v79
  %219 = vmatprep.subr.mxu0 0.0
  %220 = vmatpush1.msra.mxu0 %v80
  %221 = vmatprep.subr.mxu0 0.0
  %222 = vmatpush1.msra.mxu0 %v81
  %223 = vmatprep.mubr.f32.mxu0 %v17
  %224 = vmatmul.mubr.f32.gmra.mrb[0].mxu0 %v16
  %v225 = vpop.f32.mrb[0].mxu0
  %v226 = vadd.f32 %v156, %v225
  %v227 = vpop.f32.mrb[0].mxu0
  %228 = vdwg.mxu0
  %229 = vst [vmem:[%s3] sm:$0xff] %v226
  // Predicated region
  $region14: #{convnet_forward.9} parent=0 // pred_check
    _
  $region15: #{convnet_forward.9} parent=0 // pred_check_branch
    %231 = sbr.rel (0) target = $region17
  $region16: #{convnet_forward.9} parent=0 // pred_region
    _
  $region17: #{convnet_forward.9} parent=0 // pred_fallthru
    _
  // Predicated region
  $region18: #{convnet_forward.9} parent=0 // pred_check
    _
  $region19: #{convnet_forward.9} parent=0 // pred_check_branch
    %233 = sbr.rel (0) target = $region21
  $region20: #{convnet_forward.9} parent=0 // pred_region
    _
  $region21: #{convnet_forward.9} parent=0 // pred_fallthru
    _

</llo_original>
